<compile_context>
chip_gen: v7x
topology: tpu7x:2x2x1
jax: 0.10.0
libtpu: 0.0.40
codegen_flags: <defaults>
</compile_context>

<pallas_src>
import functools
import math

import jax
import jax.numpy as jnp
from jax.experimental import pallas as pl
from jax.experimental.pallas import tpu as pltpu

LN_EPS = 1e-5                       # nn.LayerNorm default
VMEM_LIMIT = 48 * 1024 * 1024       # fits v7x's 64 MiB with headroom, >> defaults

# Constant-index blocks (weights/biases/LN params) never change block index:
# single-buffer them so they don't pay the default 2x VMEM for pipelining.
_RESIDENT = dict(pipeline_mode=pl.Buffered(1))


# ----------------------------- helpers ---------------------------------------

def _ln(x, g, b):
    """LayerNorm over the last dim (f32 math). x: (N, D); g, b: (1, D)."""
    mean = jnp.mean(x, axis=-1, keepdims=True)
    var = jnp.mean((x - mean) ** 2, axis=-1, keepdims=True)
    return (x - mean) * jax.lax.rsqrt(var + LN_EPS) * g + b


def _pick_tile(total, target):
    """Largest divisor of `total` <= target, preferring MXU-friendly multiples
    (256, then 128, then 8); else full extent (always layout-legal)."""
    if total <= target:
        return total
    for align in (256, 128, 8):
        start = target - (target % align)
        for t in range(start, 0, -align):
            if t > 0 and total % t == 0:
                return t
    return total


# ----------------------------- kernels ----------------------------------------

def _attn_block_kernel(x_ref, kv_ref, mask_ref, g_ref, b_ref,
                       wq_ref, bq_ref, wk_ref, bk_ref, wv_ref, bv_ref,
                       wo_ref, bo_ref, o_ref, k_scr, v_scr,
                       *, num_heads, normalize_kv):
    """out = x + MHA(LN(x), kv', kv', mask) where kv' = LN(kv) if normalize_kv
    (self-attention) else kv (cross-attention, raw encoder output).

    K/V are projected once per batch element (si == 0) into head-split bf16
    VMEM scratch and reused by every query tile of that batch element."""
    H = num_heads
    D = x_ref.shape[-1]
    dv = D // H
    g = g_ref[...]                   # (1, D) f32
    b = b_ref[...]

    # ---- K/V path: hoisted out of the per-query-tile loop -------------------
    @pl.when(pl.program_id(1) == 0)
    def _():
        kv = kv_ref[0]                                            # (Sk, D) f32
        kvn = _ln(kv, g, b) if normalize_kv else kv
        kvn = kvn.astype(jnp.bfloat16)
        K = jnp.dot(kvn, wk_ref[...],
                    preferred_element_type=jnp.float32) + bk_ref[...]
        V = jnp.dot(kvn, wv_ref[...],
                    preferred_element_type=jnp.float32) + bv_ref[...]
        Sk = K.shape[0]
        # Head-split once, store bf16: (H, Sk, dv).
        k_scr[...] = K.reshape(Sk, H, dv).transpose(1, 0, 2).astype(jnp.bfloat16)
        v_scr[...] = V.reshape(Sk, H, dv).transpose(1, 0, 2).astype(jnp.bfloat16)

    # ---- per-query-tile work -------------------------------------------------
    x = x_ref[0]                                                  # (tq, D) f32
    mask = mask_ref[0]                                            # (tq, Sk) int8
    scale = jnp.float32(1.0 / math.sqrt(dv))

    xn = _ln(x, g, b)
    Q = (jnp.dot(xn.astype(jnp.bfloat16), wq_ref[...],
                 preferred_element_type=jnp.float32) + bq_ref[...]) * scale
    tq = Q.shape[0]
    Qh = Q.reshape(tq, H, dv).transpose(1, 0, 2).astype(jnp.bfloat16)  # (H,tq,dv)

    # TODO(synk): for Sk beyond a few thousand keys, tile Sk with an online
    # (flash-style) softmax instead of materializing the (H, tq, Sk) scores.
    # TODO(synk): dv = D/H < 128 underfills the MXU; pad/fold heads in real
    # configs so the attention contractions are >= 128 wide.
    s = jnp.einsum("hqd,hkd->hqk", Qh, k_scr[...],
                   preferred_element_type=jnp.float32)            # (H, tq, Sk)
    s = jnp.where(mask[None, :, :] != 0, jnp.float32(1e-9), s)

    # Softmax; the divide goes to the EUP via approximate reciprocal.
    m = jnp.max(s, axis=-1, keepdims=True)
    e = jnp.exp(s - m)
    p = e * pl.reciprocal(jnp.sum(e, axis=-1, keepdims=True), approx=True)

    ctx = jnp.einsum("hqk,hkd->hqd", p.astype(jnp.bfloat16), v_scr[...],
                     preferred_element_type=jnp.float32)          # (H, tq, dv)
    ctx = ctx.transpose(1, 0, 2).reshape(tq, D)

    y = jnp.dot(ctx.astype(jnp.bfloat16), wo_ref[...],
                preferred_element_type=jnp.float32) + bo_ref[...]
    o_ref[0] = x + y                                              # fused residual


def _ffn_block_kernel(x_ref, g_ref, b_ref, w1_ref, b1_ref, w2_ref, b2_ref, o_ref):
    """out = x + Linear2(ReLU(Linear1(LN(x))))   (dropout = identity)."""
    x = x_ref[...]                                                # (rows, D) f32
    xn = _ln(x, g_ref[...], b_ref[...]).astype(jnp.bfloat16)
    h = jnp.dot(xn, w1_ref[...],
                preferred_element_type=jnp.float32) + b1_ref[...]
    h = jnp.maximum(h, 0.0).astype(jnp.bfloat16)
    y = jnp.dot(h, w2_ref[...],
                preferred_element_type=jnp.float32) + b2_ref[...]
    o_ref[...] = x + y


# ----------------------------- wrappers ----------------------------------------

def attn_block(x, kv, mask, p, ln_g, ln_b, num_heads, *, normalize_kv, tq=None):
    """x + MultiheadAttention(LN(x), kv', kv', mask) with LN/residual fused."""
    B, Sq, D = x.shape
    Sk = kv.shape[1]
    H = num_heads
    dv = D // H
    if tq is None:
        tq = _pick_tile(Sq, 256)
    assert Sq % tq == 0

    # bf16 weight copies feed the MXU at full rate and halve VMEM/DMA;
    # biases stay f32 (added after f32 accumulation).
    wq, wk, wv, wo = (p[k].astype(jnp.bfloat16) for k in ("wq", "wk", "wv", "wo"))

    kernel = functools.partial(_attn_block_kernel,
                               num_heads=num_heads, normalize_kv=normalize_kv)

    # Masks that are broadcast over batch (leading dim 1) are shipped once.
    mb = mask.shape[0]
    if mb == 1:
        mask_map = lambda bi, si: (0, si, 0)
    else:
        mask_map = lambda bi, si: (bi, si, 0)

    x_spec = pl.BlockSpec((1, tq, D), lambda bi, si: (bi, si, 0))
    kv_spec = pl.BlockSpec((1, Sk, D), lambda bi, si: (bi, 0, 0))
    mask_spec = pl.BlockSpec((1, tq, Sk), mask_map)
    vec_spec = pl.BlockSpec((1, D), lambda bi, si: (0, 0), **_RESIDENT)
    w_spec = pl.BlockSpec((D, D), lambda bi, si: (0, 0), **_RESIDENT)
    out_spec = pl.BlockSpec((1, tq, D), lambda bi, si: (bi, si, 0))

    return pl.pallas_call(
        kernel,
        out_shape=jax.ShapeDtypeStruct((B, Sq, D), jnp.float32),
        grid=(B, Sq // tq),
        in_specs=[x_spec, kv_spec, mask_spec, vec_spec, vec_spec,
                  w_spec, vec_spec,   # wq, bq
                  w_spec, vec_spec,   # wk, bk
                  w_spec, vec_spec,   # wv, bv
                  w_spec, vec_spec],  # wo, bo
        out_specs=out_spec,
        scratch_shapes=[pltpu.VMEM((H, Sk, dv), jnp.bfloat16),   # K (head-split)
                        pltpu.VMEM((H, Sk, dv), jnp.bfloat16)],  # V (head-split)
        compiler_params=pltpu.CompilerParams(
            dimension_semantics=("parallel", "arbitrary"),
            vmem_limit_bytes=VMEM_LIMIT),
    )(x, kv, mask, ln_g, ln_b,
      wq, p["bq"], wk, p["bk"], wv, p["bv"], wo, p["bo"])


def ffn_block(x, ln_g, ln_b, p, *, block_rows=None):
    """x + FFN(LN(x)) with LN/residual fused; grid over row tiles of (B*S, D)."""
    B, S, D = x.shape
    rows = B * S
    d_ff = p["w1"].shape[1]
    if block_rows is None:
        block_rows = _pick_tile(rows, 512)
    assert rows % block_rows == 0

    w1 = p["w1"].astype(jnp.bfloat16)
    w2 = p["w2"].astype(jnp.bfloat16)

    x2 = x.reshape(rows, D)
    # TODO(synk): for d_ff so large that even bf16 w1/w2 exceed the VMEM budget
    # (v7x), add a d_ff grid reduction axis with a VMEM accumulator (pl.when
    # init/finalize) instead of keeping both weights fully resident.
    y2 = pl.pallas_call(
        _ffn_block_kernel,
        out_shape=jax.ShapeDtypeStruct((rows, D), jnp.float32),
        grid=(rows // block_rows,),
        in_specs=[pl.BlockSpec((block_rows, D), lambda i: (i, 0)),
                  pl.BlockSpec((1, D), lambda i: (0, 0), **_RESIDENT),
                  pl.BlockSpec((1, D), lambda i: (0, 0), **_RESIDENT),
                  pl.BlockSpec((D, d_ff), lambda i: (0, 0), **_RESIDENT),
                  pl.BlockSpec((1, d_ff), lambda i: (0, 0), **_RESIDENT),
                  pl.BlockSpec((d_ff, D), lambda i: (0, 0), **_RESIDENT),
                  pl.BlockSpec((1, D), lambda i: (0, 0), **_RESIDENT)],
        out_specs=pl.BlockSpec((block_rows, D), lambda i: (i, 0)),
        compiler_params=pltpu.CompilerParams(
            dimension_semantics=("parallel",),
            vmem_limit_bytes=VMEM_LIMIT),
    )(x2, ln_g, ln_b, w1, p["b1"], w2, p["b2"])
    return y2.reshape(B, S, D)


def decoder_block_forward(x, encoder_output, src_mask, tgt_mask, params, num_heads,
                          *, tq=None, ffn_block_rows=None):
    # residual 1: self attention (LN1 fused; kv path also normalized)
    x = attn_block(x, x, tgt_mask, params["self_attn"],
                   params["ln1_g"], params["ln1_b"], num_heads,
                   normalize_kv=True, tq=tq)
    # residual 2: cross attention (LN2 fused into q path; kv = raw encoder out)
    x = attn_block(x, encoder_output, src_mask, params["cross_attn"],
                   params["ln2_g"], params["ln2_b"], num_heads,
                   normalize_kv=False, tq=tq)
    # residual 3: feed-forward (LN3 fused)
    x = ffn_block(x, params["ln3_g"], params["ln3_b"], params["ffn"],
                  block_rows=ffn_block_rows)
    return x


# ----------------------------- pure-JAX reference (f32, module semantics) -----

def _ref_mha(q_in, kv_in, mask, p, H):
    Q = q_in @ p["wq"] + p["bq"]
    K = kv_in @ p["wk"] + p["bk"]
    V = kv_in @ p["wv"] + p["bv"]
    B, Sq, D = Q.shape
    Sk = K.shape[1]
    dv = D // H
    Qh = Q.reshape(B, Sq, H, dv).transpose(0, 2, 1, 3)
    Kh = K.reshape(B, Sk, H, dv).transpose(0, 2, 1, 3)
    Vh = V.reshape(B, Sk, H, dv).transpose(0, 2, 1, 3)
    s = jnp.einsum("bhqd,bhkd->bhqk", Qh, Kh) / math.sqrt(dv)
    s = jnp.where(mask[:, None, :, :] != 0, jnp.float32(1e-9), s)
    a = jax.nn.softmax(s, axis=-1)
    o = jnp.einsum("bhqk,bhkd->bhqd", a, Vh).transpose(0, 2, 1, 3).reshape(B, Sq, D)
    return o @ p["wo"] + p["bo"]


def _ref_ln(x, g, b):
    m = jnp.mean(x, axis=-1, keepdims=True)
    v = jnp.mean((x - m) ** 2, axis=-1, keepdims=True)
    return (x - m) / jnp.sqrt(v + LN_EPS) * g + b


def _ref_forward(x, enc, src_mask, tgt_mask, params, H):
    xn = _ref_ln(x, params["ln1_g"], params["ln1_b"])
    x = x + _ref_mha(xn, xn, tgt_mask, params["self_attn"], H)
    xn = _ref_ln(x, params["ln2_g"], params["ln2_b"])
    x = x + _ref_mha(xn, enc, src_mask, params["cross_attn"], H)
    xn = _ref_ln(x, params["ln3_g"], params["ln3_b"])
    h = jnp.maximum(xn @ params["ffn"]["w1"] + params["ffn"]["b1"], 0.0)
    x = x + (h @ params["ffn"]["w2"] + params["ffn"]["b2"])
    return x


# ----------------------------- main --------------------------------------------

def _init_attn_params(key, d_model):
    ks = jax.random.split(key, 8)
    s = 0.02
    return {
        "wq": s * jax.random.normal(ks[0], (d_model, d_model), jnp.float32),
        "bq": s * jax.random.normal(ks[1], (1, d_model), jnp.float32),
        "wk": s * jax.random.normal(ks[2], (d_model, d_model), jnp.float32),
        "bk": s * jax.random.normal(ks[3], (1, d_model), jnp.float32),
        "wv": s * jax.random.normal(ks[4], (d_model, d_model), jnp.float32),
        "bv": s * jax.random.normal(ks[5], (1, d_model), jnp.float32),
        "wo": s * jax.random.normal(ks[6], (d_model, d_model), jnp.float32),
        "bo": s * jax.random.normal(ks[7], (1, d_model), jnp.float32),
    }


if __name__ == "__main__":
    B, S_tgt, S_src = 2, 16, 8
    d_model, num_heads, d_ff = 128, 4, 256   # lane-dense (multiples of 128)

    key = jax.random.PRNGKey(0)
    k_x, k_enc, k_sa, k_ca, k_ff, k_ln = jax.random.split(key, 6)

    x = jax.random.normal(k_x, (B, S_tgt, d_model), jnp.float32)
    enc = jax.random.normal(k_enc, (B, S_src, d_model), jnp.float32)

    # Masks are identical across batch -> ship with leading dim 1 (broadcast,
    # matches PyTorch masked_fill_ broadcasting).
    tgt_mask = (jnp.arange(S_tgt)[None, :] > jnp.arange(S_tgt)[:, None])
    tgt_mask = tgt_mask[None, :, :].astype(jnp.int8)               # (1, Sq, Sq)
    src_mask = jnp.zeros((1, S_tgt, S_src), jnp.int8).at[:, :, -1].set(1)

    kf = jax.random.split(k_ff, 4)
    kl = jax.random.split(k_ln, 6)
    params = {
        "self_attn": _init_attn_params(k_sa, d_model),
        "cross_attn": _init_attn_params(k_ca, d_model),
        "ffn": {
            "w1": 0.02 * jax.random.normal(kf[0], (d_model, d_ff), jnp.float32),
            "b1": 0.02 * jax.random.normal(kf[1], (1, d_ff), jnp.float32),
            "w2": 0.02 * jax.random.normal(kf[2], (d_ff, d_model), jnp.float32),
            "b2": 0.02 * jax.random.normal(kf[3], (1, d_model), jnp.float32),
        },
        "ln1_g": 1.0 + 0.1 * jax.random.normal(kl[0], (1, d_model), jnp.float32),
        "ln1_b": 0.1 * jax.random.normal(kl[1], (1, d_model), jnp.float32),
        "ln2_g": 1.0 + 0.1 * jax.random.normal(kl[2], (1, d_model), jnp.float32),
        "ln2_b": 0.1 * jax.random.normal(kl[3], (1, d_model), jnp.float32),
        "ln3_g": 1.0 + 0.1 * jax.random.normal(kl[4], (1, d_model), jnp.float32),
        "ln3_b": 0.1 * jax.random.normal(kl[5], (1, d_model), jnp.float32),
    }

    # tq=8 with S_tgt=16 exercises the multi-tile query grid (K/V scratch reuse
    # across si); ffn_block_rows=16 exercises the multi-tile FFN grid.
    out = decoder_block_forward(x, enc, src_mask, tgt_mask, params, num_heads,
                                tq=8, ffn_block_rows=16)
    out = jax.block_until_ready(out)

    ref = _ref_forward(x, enc, src_mask, tgt_mask, params, num_heads)
    assert out.shape == (B, S_tgt, d_model)
    # Mixed-precision (bf16 MXU inputs, f32 accum) vs pure-f32 reference.
    assert jnp.allclose(out, ref, rtol=2e-2, atol=2e-2), "mismatch vs JAX reference"

    print("KERNEL_OK")
</pallas_src>

<mosaic_0001>
module attributes {stable_mosaic.version = 11 : i64} {
  func.func @_attn_block_kernel(%arg0: i32, %arg1: i32, %arg2: memref<1x8x128xf32, #tpu.memory_space<vmem>>, %arg3: memref<1x16x128xf32, #tpu.memory_space<vmem>>, %arg4: memref<1x8x16xi8, #tpu.memory_space<vmem>>, %arg5: memref<1x128xf32, #tpu.memory_space<vmem>>, %arg6: memref<1x128xf32, #tpu.memory_space<vmem>>, %arg7: memref<128x128xbf16, #tpu.memory_space<vmem>>, %arg8: memref<1x128xf32, #tpu.memory_space<vmem>>, %arg9: memref<128x128xbf16, #tpu.memory_space<vmem>>, %arg10: memref<1x128xf32, #tpu.memory_space<vmem>>, %arg11: memref<128x128xbf16, #tpu.memory_space<vmem>>, %arg12: memref<1x128xf32, #tpu.memory_space<vmem>>, %arg13: memref<128x128xbf16, #tpu.memory_space<vmem>>, %arg14: memref<1x128xf32, #tpu.memory_space<vmem>>, %arg15: memref<1x8x128xf32, #tpu.memory_space<vmem>>, %arg16: memref<4x16x32xbf16, #tpu.memory_space<vmem>>, %arg17: memref<4x16x32xbf16, #tpu.memory_space<vmem>>) attributes {dimension_semantics = [#tpu.dimension_semantics<parallel>, #tpu.dimension_semantics<arbitrary>], iteration_bounds = array<i64: 2, 2>, scalar_prefetch = 0 : i64, scratch_operands = 2 : i64, tpu.core_type = #tpu.core_type<tc>, window_params = [{transform_indices = @transform_0, window_bounds = array<i64: 1, 8, 128>}, {transform_indices = @transform_1, window_bounds = array<i64: 1, 16, 128>}, {transform_indices = @transform_2, window_bounds = array<i64: 1, 8, 16>}, {pipeline_mode = #tpu.pipeline_mode<synchronous>, transform_indices = @transform_3, window_bounds = array<i64: 1, 128>}, {pipeline_mode = #tpu.pipeline_mode<synchronous>, transform_indices = @transform_4, window_bounds = array<i64: 1, 128>}, {pipeline_mode = #tpu.pipeline_mode<synchronous>, transform_indices = @transform_5, window_bounds = array<i64: 128, 128>}, {pipeline_mode = #tpu.pipeline_mode<synchronous>, transform_indices = @transform_6, window_bounds = array<i64: 1, 128>}, {pipeline_mode = #tpu.pipeline_mode<synchronous>, transform_indices = @transform_7, window_bounds = array<i64: 128, 128>}, {pipeline_mode = #tpu.pipeline_mode<synchronous>, transform_indices = @transform_8, window_bounds = array<i64: 1, 128>}, {pipeline_mode = #tpu.pipeline_mode<synchronous>, transform_indices = @transform_9, window_bounds = array<i64: 128, 128>}, {pipeline_mode = #tpu.pipeline_mode<synchronous>, transform_indices = @transform_10, window_bounds = array<i64: 1, 128>}, {pipeline_mode = #tpu.pipeline_mode<synchronous>, transform_indices = @transform_11, window_bounds = array<i64: 128, 128>}, {pipeline_mode = #tpu.pipeline_mode<synchronous>, transform_indices = @transform_12, window_bounds = array<i64: 1, 128>}, {transform_indices = @transform_13, window_bounds = array<i64: 1, 8, 128>}]} {
    %c0 = arith.constant 0 : index
    %c0_0 = arith.constant 0 : index
    %0 = vector.load %arg5[%c0, %c0_0] : memref<1x128xf32, #tpu.memory_space<vmem>>, vector<1x128xf32>
    %c0_1 = arith.constant 0 : index
    %c0_2 = arith.constant 0 : index
    %1 = vector.load %arg6[%c0_1, %c0_2] : memref<1x128xf32, #tpu.memory_space<vmem>>, vector<1x128xf32>
    %c0_i32 = arith.constant 0 : i32
    %2 = arith.cmpi eq, %arg1, %c0_i32 : i32
    %3 = arith.extui %2 : i1 to i32
    %c0_i32_3 = arith.constant 0 : i32
    %4 = arith.cmpi ne, %3, %c0_i32_3 : i32
    scf.if %4 {
      %c0_39 = arith.constant 0 : index
      %c0_40 = arith.constant 0 : index
      %c0_41 = arith.constant 0 : index
      %76 = vector.load %arg3[%c0_39, %c0_40, %c0_41] : memref<1x16x128xf32, #tpu.memory_space<vmem>>, vector<1x16x128xf32>
      %77 = vector.shape_cast %76 : vector<1x16x128xf32> to vector<16x128xf32>
      %cst_42 = arith.constant dense<0.000000e+00> : vector<16xf32>
      %78 = vector.multi_reduction <add>, %77, %cst_42 [1] : vector<16x128xf32> to vector<16xf32>
      %79 = vector.shape_cast %78 : vector<16xf32> to vector<16x1xf32>
      %cst_43 = arith.constant 1.280000e+02 : f32
      %80 = vector.broadcast %cst_43 : f32 to vector<16x1xf32>
      %81 = arith.divf %79, %80 : vector<16x1xf32>
      %82 = vector.broadcast %81 : vector<16x1xf32> to vector<16x128xf32>
      %83 = arith.subf %77, %82 : vector<16x128xf32>
      %84 = arith.mulf %83, %83 : vector<16x128xf32>
      %cst_44 = arith.constant dense<0.000000e+00> : vector<16xf32>
      %85 = vector.multi_reduction <add>, %84, %cst_44 [1] : vector<16x128xf32> to vector<16xf32>
      %86 = vector.shape_cast %85 : vector<16xf32> to vector<16x1xf32>
      %cst_45 = arith.constant 1.280000e+02 : f32
      %87 = vector.broadcast %cst_45 : f32 to vector<16x1xf32>
      %88 = arith.divf %86, %87 : vector<16x1xf32>
      %89 = vector.broadcast %81 : vector<16x1xf32> to vector<16x128xf32>
      %90 = arith.subf %77, %89 : vector<16x128xf32>
      %cst_46 = arith.constant 9.99999974E-6 : f32
      %91 = vector.broadcast %cst_46 : f32 to vector<16x1xf32>
      %92 = arith.addf %88, %91 : vector<16x1xf32>
      %93 = math.rsqrt %92 : vector<16x1xf32>
      %94 = vector.broadcast %93 : vector<16x1xf32> to vector<16x128xf32>
      %95 = arith.mulf %90, %94 : vector<16x128xf32>
      %96 = vector.broadcast %0 : vector<1x128xf32> to vector<16x128xf32>
      %97 = arith.mulf %95, %96 : vector<16x128xf32>
      %98 = vector.broadcast %1 : vector<1x128xf32> to vector<16x128xf32>
      %99 = arith.addf %97, %98 : vector<16x128xf32>
      %100 = arith.truncf %99 : vector<16x128xf32> to vector<16x128xbf16>
      %c0_47 = arith.constant 0 : index
      %c0_48 = arith.constant 0 : index
      %101 = vector.load %arg9[%c0_47, %c0_48] : memref<128x128xbf16, #tpu.memory_space<vmem>>, vector<128x128xbf16>
      %cst_49 = arith.constant dense<0.000000e+00> : vector<16x128xf32>
      %102 = tpu.matmul %100, %101, %cst_49 {dimension_numbers = #tpu.dot_dimension_numbers<[1], [0], [0], [1], [0, 0, 1, 1], [], []>} : vector<16x128xbf16>, vector<128x128xbf16>, vector<16x128xf32> -> vector<16x128xf32>
      %c0_50 = arith.constant 0 : index
      %c0_51 = arith.constant 0 : index
      %103 = vector.load %arg10[%c0_50, %c0_51] : memref<1x128xf32, #tpu.memory_space<vmem>>, vector<1x128xf32>
      %104 = vector.broadcast %103 : vector<1x128xf32> to vector<16x128xf32>
      %105 = arith.addf %102, %104 : vector<16x128xf32>
      %c0_52 = arith.constant 0 : index
      %c0_53 = arith.constant 0 : index
      %106 = vector.load %arg11[%c0_52, %c0_53] : memref<128x128xbf16, #tpu.memory_space<vmem>>, vector<128x128xbf16>
      %cst_54 = arith.constant dense<0.000000e+00> : vector<16x128xf32>
      %107 = tpu.matmul %100, %106, %cst_54 {dimension_numbers = #tpu.dot_dimension_numbers<[1], [0], [0], [1], [0, 0, 1, 1], [], []>} : vector<16x128xbf16>, vector<128x128xbf16>, vector<16x128xf32> -> vector<16x128xf32>
      %c0_55 = arith.constant 0 : index
      %c0_56 = arith.constant 0 : index
      %108 = vector.load %arg12[%c0_55, %c0_56] : memref<1x128xf32, #tpu.memory_space<vmem>>, vector<1x128xf32>
      %109 = vector.broadcast %108 : vector<1x128xf32> to vector<16x128xf32>
      %110 = arith.addf %107, %109 : vector<16x128xf32>
      %111 = vector.shape_cast %105 : vector<16x128xf32> to vector<16x4x32xf32>
      %112 = tpu.transpose %111, [1, 0, 2] : vector<16x4x32xf32> -> vector<4x16x32xf32>
      %113 = arith.truncf %112 : vector<4x16x32xf32> to vector<4x16x32xbf16>
      %c0_57 = arith.constant 0 : index
      %c0_58 = arith.constant 0 : index
      %c0_59 = arith.constant 0 : index
      %114 = vector.load %arg16[%c0_57, %c0_58, %c0_59] : memref<4x16x32xbf16, #tpu.memory_space<vmem>>, vector<4x16x32xbf16>
      tpu.vector_store %arg16[%c0_57, %c0_58, %c0_59], %113 {strides = array<i32>} : memref<4x16x32xbf16, #tpu.memory_space<vmem>>, vector<4x16x32xbf16>,
      %115 = vector.shape_cast %110 : vector<16x128xf32> to vector<16x4x32xf32>
      %116 = tpu.transpose %115, [1, 0, 2] : vector<16x4x32xf32> -> vector<4x16x32xf32>
      %117 = arith.truncf %116 : vector<4x16x32xf32> to vector<4x16x32xbf16>
      %c0_60 = arith.constant 0 : index
      %c0_61 = arith.constant 0 : index
      %c0_62 = arith.constant 0 : index
      %118 = vector.load %arg17[%c0_60, %c0_61, %c0_62] : memref<4x16x32xbf16, #tpu.memory_space<vmem>>, vector<4x16x32xbf16>
      tpu.vector_store %arg17[%c0_60, %c0_61, %c0_62], %117 {strides = array<i32>} : memref<4x16x32xbf16, #tpu.memory_space<vmem>>, vector<4x16x32xbf16>,
    } else {
    }
    %c0_4 = arith.constant 0 : index
    %c0_5 = arith.constant 0 : index
    %c0_6 = arith.constant 0 : index
    %5 = vector.load %arg2[%c0_4, %c0_5, %c0_6] : memref<1x8x128xf32, #tpu.memory_space<vmem>>, vector<1x8x128xf32>
    %6 = vector.shape_cast %5 : vector<1x8x128xf32> to vector<8x128xf32>
    %c0_7 = arith.constant 0 : index
    %c0_8 = arith.constant 0 : index
    %c0_9 = arith.constant 0 : index
    %7 = vector.load %arg4[%c0_7, %c0_8, %c0_9] : memref<1x8x16xi8, #tpu.memory_space<vmem>>, vector<1x8x16xi8>
    %8 = vector.shape_cast %7 : vector<1x8x16xi8> to vector<8x16xi8>
    %cst = arith.constant dense<0.000000e+00> : vector<8xf32>
    %9 = vector.multi_reduction <add>, %6, %cst [1] : vector<8x128xf32> to vector<8xf32>
    %10 = vector.shape_cast %9 : vector<8xf32> to vector<8x1xf32>
    %cst_10 = arith.constant 1.280000e+02 : f32
    %11 = vector.broadcast %cst_10 : f32 to vector<8x1xf32>
    %12 = arith.divf %10, %11 : vector<8x1xf32>
    %13 = vector.broadcast %12 : vector<8x1xf32> to vector<8x128xf32>
    %14 = arith.subf %6, %13 : vector<8x128xf32>
    %15 = arith.mulf %14, %14 : vector<8x128xf32>
    %cst_11 = arith.constant dense<0.000000e+00> : vector<8xf32>
    %16 = vector.multi_reduction <add>, %15, %cst_11 [1] : vector<8x128xf32> to vector<8xf32>
    %17 = vector.shape_cast %16 : vector<8xf32> to vector<8x1xf32>
    %cst_12 = arith.constant 1.280000e+02 : f32
    %18 = vector.broadcast %cst_12 : f32 to vector<8x1xf32>
    %19 = arith.divf %17, %18 : vector<8x1xf32>
    %20 = vector.broadcast %12 : vector<8x1xf32> to vector<8x128xf32>
    %21 = arith.subf %6, %20 : vector<8x128xf32>
    %cst_13 = arith.constant 9.99999974E-6 : f32
    %22 = vector.broadcast %cst_13 : f32 to vector<8x1xf32>
    %23 = arith.addf %19, %22 : vector<8x1xf32>
    %24 = math.rsqrt %23 : vector<8x1xf32>
    %25 = vector.broadcast %24 : vector<8x1xf32> to vector<8x128xf32>
    %26 = arith.mulf %21, %25 : vector<8x128xf32>
    %27 = vector.broadcast %0 : vector<1x128xf32> to vector<8x128xf32>
    %28 = arith.mulf %26, %27 : vector<8x128xf32>
    %29 = vector.broadcast %1 : vector<1x128xf32> to vector<8x128xf32>
    %30 = arith.addf %28, %29 : vector<8x128xf32>
    %31 = arith.truncf %30 : vector<8x128xf32> to vector<8x128xbf16>
    %c0_14 = arith.constant 0 : index
    %c0_15 = arith.constant 0 : index
    %32 = vector.load %arg7[%c0_14, %c0_15] : memref<128x128xbf16, #tpu.memory_space<vmem>>, vector<128x128xbf16>
    %cst_16 = arith.constant dense<0.000000e+00> : vector<8x128xf32>
    %33 = tpu.matmul %31, %32, %cst_16 {dimension_numbers = #tpu.dot_dimension_numbers<[1], [0], [0], [1], [0, 0, 1, 1], [], []>} : vector<8x128xbf16>, vector<128x128xbf16>, vector<8x128xf32> -> vector<8x128xf32>
    %c0_17 = arith.constant 0 : index
    %c0_18 = arith.constant 0 : index
    %34 = vector.load %arg8[%c0_17, %c0_18] : memref<1x128xf32, #tpu.memory_space<vmem>>, vector<1x128xf32>
    %35 = vector.broadcast %34 : vector<1x128xf32> to vector<8x128xf32>
    %36 = arith.addf %33, %35 : vector<8x128xf32>
    %cst_19 = arith.constant 0.176776692 : f32
    %37 = vector.broadcast %cst_19 : f32 to vector<8x128xf32>
    %38 = arith.mulf %36, %37 : vector<8x128xf32>
    %39 = vector.shape_cast %38 : vector<8x128xf32> to vector<8x4x32xf32>
    %40 = tpu.transpose %39, [1, 0, 2] : vector<8x4x32xf32> -> vector<4x8x32xf32>
    %41 = arith.truncf %40 : vector<4x8x32xf32> to vector<4x8x32xbf16>
    %c0_20 = arith.constant 0 : index
    %c0_21 = arith.constant 0 : index
    %c0_22 = arith.constant 0 : index
    %42 = vector.load %arg16[%c0_20, %c0_21, %c0_22] : memref<4x16x32xbf16, #tpu.memory_space<vmem>>, vector<4x16x32xbf16>
    "tpu.trace_start"() <{level = 10 : i32, message = "hqd,hkd->hqk"}> : () -> ()
    %cst_23 = arith.constant dense<0.000000e+00> : vector<4x8x16xf32>
    %43 = tpu.matmul %41, %42, %cst_23 {dimension_numbers = #tpu.dot_dimension_numbers<[2], [2], [1], [1], [0, 0, 0, 1, 1, 1], [0], [0]>} : vector<4x8x32xbf16>, vector<4x16x32xbf16>, vector<4x8x16xf32> -> vector<4x8x16xf32>
    "tpu.trace_stop"() : () -> ()
    %44 = vector.shape_cast %8 : vector<8x16xi8> to vector<1x8x16xi8>
    %c0_i8 = arith.constant 0 : i8
    %45 = vector.broadcast %c0_i8 : i8 to vector<1x8x16xi8>
    %46 = arith.cmpi ne, %44, %45 : vector<1x8x16xi8>
    %cst_24 = arith.constant 9.99999971E-10 : f32
    %47 = vector.shape_cast %46 : vector<1x8x16xi1> to vector<1x8x16xi1>
    %48 = vector.broadcast %47 : vector<1x8x16xi1> to vector<4x8x16xi1>
    %49 = vector.broadcast %cst_24 : f32 to vector<4x8x16xf32>
    %50 = arith.select %48, %49, %43 : vector<4x8x16xi1>, vector<4x8x16xf32>
    %cst_25 = arith.constant dense<0xFF800000> : vector<4x8xf32>
    %51 = vector.multi_reduction <maximumf>, %50, %cst_25 [2] : vector<4x8x16xf32> to vector<4x8xf32>
    %52 = vector.shape_cast %51 : vector<4x8xf32> to vector<4x8x1xf32>
    %53 = vector.broadcast %52 : vector<4x8x1xf32> to vector<4x8x16xf32>
    %54 = arith.subf %50, %53 : vector<4x8x16xf32>
    %55 = math.exp %54 : vector<4x8x16xf32>
    %cst_26 = arith.constant dense<0.000000e+00> : vector<4x8xf32>
    %56 = vector.multi_reduction <add>, %55, %cst_26 [2] : vector<4x8x16xf32> to vector<4x8xf32>
    %57 = vector.shape_cast %56 : vector<4x8xf32> to vector<4x8x1xf32>
    %58 = tpu.reciprocal %57 {approx = true} : vector<4x8x1xf32> -> vector<4x8x1xf32>
    %59 = vector.broadcast %58 : vector<4x8x1xf32> to vector<4x8x16xf32>
    %60 = arith.mulf %55, %59 : vector<4x8x16xf32>
    %61 = arith.truncf %60 : vector<4x8x16xf32> to vector<4x8x16xbf16>
    %c0_27 = arith.constant 0 : index
    %c0_28 = arith.constant 0 : index
    %c0_29 = arith.constant 0 : index
    %62 = vector.load %arg17[%c0_27, %c0_28, %c0_29] : memref<4x16x32xbf16, #tpu.memory_space<vmem>>, vector<4x16x32xbf16>
    "tpu.trace_start"() <{level = 10 : i32, message = "hqk,hkd->hqd"}> : () -> ()
    %cst_30 = arith.constant dense<0.000000e+00> : vector<4x8x32xf32>
    %63 = tpu.matmul %61, %62, %cst_30 {dimension_numbers = #tpu.dot_dimension_numbers<[2], [1], [1], [2], [0, 0, 0, 1, 1, 2], [0], [0]>} : vector<4x8x16xbf16>, vector<4x16x32xbf16>, vector<4x8x32xf32> -> vector<4x8x32xf32>
    "tpu.trace_stop"() : () -> ()
    %64 = tpu.transpose %63, [1, 0, 2] : vector<4x8x32xf32> -> vector<8x4x32xf32>
    %65 = vector.shape_cast %64 : vector<8x4x32xf32> to vector<8x128xf32>
    %66 = arith.truncf %65 : vector<8x128xf32> to vector<8x128xbf16>
    %c0_31 = arith.constant 0 : index
    %c0_32 = arith.constant 0 : index
    %67 = vector.load %arg13[%c0_31, %c0_32] : memref<128x128xbf16, #tpu.memory_space<vmem>>, vector<128x128xbf16>
    %cst_33 = arith.constant dense<0.000000e+00> : vector<8x128xf32>
    %68 = tpu.matmul %66, %67, %cst_33 {dimension_numbers = #tpu.dot_dimension_numbers<[1], [0], [0], [1], [0, 0, 1, 1], [], []>} : vector<8x128xbf16>, vector<128x128xbf16>, vector<8x128xf32> -> vector<8x128xf32>
    %c0_34 = arith.constant 0 : index
    %c0_35 = arith.constant 0 : index
    %69 = vector.load %arg14[%c0_34, %c0_35] : memref<1x128xf32, #tpu.memory_space<vmem>>, vector<1x128xf32>
    %70 = vector.broadcast %69 : vector<1x128xf32> to vector<8x128xf32>
    %71 = arith.addf %68, %70 : vector<8x128xf32>
    %72 = arith.addf %6, %71 : vector<8x128xf32>
    %c0_36 = arith.constant 0 : index
    %c0_37 = arith.constant 0 : index
    %c0_38 = arith.constant 0 : index
    %73 = vector.load %arg15[%c0_36, %c0_37, %c0_38] : memref<1x8x128xf32, #tpu.memory_space<vmem>>, vector<1x8x128xf32>
    %74 = vector.shape_cast %73 : vector<1x8x128xf32> to vector<8x128xf32>
    %75 = vector.shape_cast %72 : vector<8x128xf32> to vector<1x8x128xf32>
    tpu.vector_store %arg15[%c0_36, %c0_37, %c0_38], %75 {strides = array<i32>} : memref<1x8x128xf32, #tpu.memory_space<vmem>>, vector<1x8x128xf32>,
    return
  }
  func.func @transform_0(%arg0: i32, %arg1: i32) -> (i32, i32, i32) {
    %c0_i32 = arith.constant 0 : i32
    %c0_i32_0 = arith.constant 0 : i32
    return %arg0, %arg1, %c0_i32 : i32, i32, i32
  }
  func.func @transform_1(%arg0: i32, %arg1: i32) -> (i32, i32, i32) {
    %c0_i32 = arith.constant 0 : i32
    %c0_i32_0 = arith.constant 0 : i32
    %c0_i32_1 = arith.constant 0 : i32
    return %arg0, %c0_i32, %c0_i32_0 : i32, i32, i32
  }
  func.func @transform_2(%arg0: i32, %arg1: i32) -> (i32, i32, i32) {
    %c0_i32 = arith.constant 0 : i32
    %c0_i32_0 = arith.constant 0 : i32
    %c0_i32_1 = arith.constant 0 : i32
    return %c0_i32, %arg1, %c0_i32_0 : i32, i32, i32
  }
  func.func @transform_3(%arg0: i32, %arg1: i32) -> (i32, i32) {
    %c0_i32 = arith.constant 0 : i32
    %c0_i32_0 = arith.constant 0 : i32
    %c0_i32_1 = arith.constant 0 : i32
    return %c0_i32, %c0_i32_0 : i32, i32
  }
  func.func @transform_4(%arg0: i32, %arg1: i32) -> (i32, i32) {
    %c0_i32 = arith.constant 0 : i32
    %c0_i32_0 = arith.constant 0 : i32
    %c0_i32_1 = arith.constant 0 : i32
    return %c0_i32, %c0_i32_0 : i32, i32
  }
  func.func @transform_5(%arg0: i32, %arg1: i32) -> (i32, i32) {
    %c0_i32 = arith.constant 0 : i32
    %c0_i32_0 = arith.constant 0 : i32
    %c0_i32_1 = arith.constant 0 : i32
    return %c0_i32, %c0_i32_0 : i32, i32
  }
  func.func @transform_6(%arg0: i32, %arg1: i32) -> (i32, i32) {
    %c0_i32 = arith.constant 0 : i32
    %c0_i32_0 = arith.constant 0 : i32
    %c0_i32_1 = arith.constant 0 : i32
    return %c0_i32, %c0_i32_0 : i32, i32
  }
  func.func @transform_7(%arg0: i32, %arg1: i32) -> (i32, i32) {
    %c0_i32 = arith.constant 0 : i32
    %c0_i32_0 = arith.constant 0 : i32
    %c0_i32_1 = arith.constant 0 : i32
    return %c0_i32, %c0_i32_0 : i32, i32
  }
  func.func @transform_8(%arg0: i32, %arg1: i32) -> (i32, i32) {
    %c0_i32 = arith.constant 0 : i32
    %c0_i32_0 = arith.constant 0 : i32
    %c0_i32_1 = arith.constant 0 : i32
    return %c0_i32, %c0_i32_0 : i32, i32
  }
  func.func @transform_9(%arg0: i32, %arg1: i32) -> (i32, i32) {
    %c0_i32 = arith.constant 0 : i32
    %c0_i32_0 = arith.constant 0 : i32
    %c0_i32_1 = arith.constant 0 : i32
    return %c0_i32, %c0_i32_0 : i32, i32
  }
  func.func @transform_10(%arg0: i32, %arg1: i32) -> (i32, i32) {
    %c0_i32 = arith.constant 0 : i32
    %c0_i32_0 = arith.constant 0 : i32
    %c0_i32_1 = arith.constant 0 : i32
    return %c0_i32, %c0_i32_0 : i32, i32
  }
  func.func @transform_11(%arg0: i32, %arg1: i32) -> (i32, i32) {
    %c0_i32 = arith.constant 0 : i32
    %c0_i32_0 = arith.constant 0 : i32
    %c0_i32_1 = arith.constant 0 : i32
    return %c0_i32, %c0_i32_0 : i32, i32
  }
  func.func @transform_12(%arg0: i32, %arg1: i32) -> (i32, i32) {
    %c0_i32 = arith.constant 0 : i32
    %c0_i32_0 = arith.constant 0 : i32
    %c0_i32_1 = arith.constant 0 : i32
    return %c0_i32, %c0_i32_0 : i32, i32
  }
  func.func @transform_13(%arg0: i32, %arg1: i32) -> (i32, i32, i32) {
    %c0_i32 = arith.constant 0 : i32
    %c0_i32_0 = arith.constant 0 : i32
    return %arg0, %arg1, %c0_i32 : i32, i32, i32
  }
}

</mosaic_0001>

<llo_original>
// kernel: tpu_custom_call.1
$region0: #{tpu_custom_call.1}
  #allocation0 [shape = 'u32[]', space=smem, size = 0x4, offset = 0x4, fixed_abs, tag = 'smem constant byte address 0x4 - core index']
  #allocation1 [shape = 'u32[144,128]{1,0:T(1,128)}', space=vmem, size = 0x12000, scoped, tag = 'internal scratch']
  #allocation2 [shape = 'bf16[4,16,32]{2,1,0:T(16,128)(2,1)}', space=vmem, size = 0x4000, scoped, tag = 'scratch operand']
  #allocation3 [shape = 'bf16[4,16,32]{2,1,0:T(16,128)(2,1)}', space=vmem, size = 0x4000, scoped, tag = 'scratch operand']
  %s0 = inlined_call_operand.hbm [shape: f32[2,16,128], index: 0, kind: input, shape index: {}]
  %s1 = inlined_call_operand.hbm [shape: f32[2,16,128], index: 1, kind: input, shape index: {}]
  %s2 = inlined_call_operand.vmem [shape: s8[1,16,16], index: 2, kind: input, shape index: {}]
  %s3 = inlined_call_operand.vmem [shape: f32[1,128], index: 3, kind: input, shape index: {}]
  %s4 = inlined_call_operand.vmem [shape: f32[1,128], index: 4, kind: input, shape index: {}]
  %s5 = inlined_call_operand.hbm [shape: bf16[128,128], index: 5, kind: input, shape index: {}]
  %s6 = inlined_call_operand.vmem [shape: f32[1,128], index: 6, kind: input, shape index: {}]
  %s7 = inlined_call_operand.hbm [shape: bf16[128,128], index: 7, kind: input, shape index: {}]
  %s8 = inlined_call_operand.vmem [shape: f32[1,128], index: 8, kind: input, shape index: {}]
  %s9 = inlined_call_operand.hbm [shape: bf16[128,128], index: 9, kind: input, shape index: {}]
  %s10 = inlined_call_operand.vmem [shape: f32[1,128], index: 10, kind: input, shape index: {}]
  %s11 = inlined_call_operand.hbm [shape: bf16[128,128], index: 11, kind: input, shape index: {}]
  %s12 = inlined_call_operand.vmem [shape: f32[1,128], index: 12, kind: input, shape index: {}]
  %s13 = inlined_call_operand.hbm [shape: f32[2,16,128], index: 13, kind: output, shape index: {}]
  %s14 = sld [smem:[#allocation0]]
  $region113: #{tpu_custom_call.1} parent=0
    _
  %s16 = ssub.s32 1, %s14
  %s17 = scalar_select 0, %s16, %s14
  $region1: #{tpu_custom_call.1} parent=0
    #allocation4 [shape = 'u8[8192]{0}', space=vmem, size = 0x2000, scoped, tag = 'input window, operand 0']
    #allocation5 [shape = 's32[2]{0}', space=sflag, size = 0x8, scoped, tag = 'scoped memory for tpu_custom_call.1']
    #allocation6 [shape = 's32[2]{0}', space=sflag, size = 0x8, scoped, tag = 'scoped memory for tpu_custom_call.1']
    #allocation7 [shape = 'u8[16384]{0}', space=vmem, size = 0x4000, scoped, tag = 'input window, operand 1']
    #allocation8 [shape = 's32[2]{0}', space=sflag, size = 0x8, scoped, tag = 'scoped memory for tpu_custom_call.1']
    #allocation9 [shape = 'u8[32768]{0}', space=vmem, size = 0x8000, scoped, tag = 'input window, operand 5, single buffered']
    #allocation10 [shape = 'u8[32768]{0}', space=vmem, size = 0x8000, scoped, tag = 'input window, operand 7, single buffered']
    #allocation11 [shape = 's32[1]{0}', space=sflag, size = 0x4, scoped, tag = 'scoped memory for tpu_custom_call.1']
    #allocation12 [shape = 'u8[32768]{0}', space=vmem, size = 0x8000, scoped, tag = 'input window, operand 9, single buffered']
    #allocation13 [shape = 'u8[32768]{0}', space=vmem, size = 0x8000, scoped, tag = 'input window, operand 11, single buffered']
    #allocation14 [shape = 's32[1]{0}', space=sflag, size = 0x4, scoped, tag = 'scoped memory for tpu_custom_call.1']
    #allocation15 [shape = 'u8[8192]{0}', space=vmem, size = 0x2000, scoped, tag = 'output window, operand 0']
    %18 = vsyncpa [#allocation5], 0
    %s19 = scalar_lea.sflag [#allocation5], 1
    %20 = vsyncpa %s19, 0
    %21 = vsyncpa [#allocation8], 0
    %s22 = scalar_lea.sflag [#allocation8], 1
    %23 = vsyncpa %s22, 0
    %24 = vsyncpa [#allocation11], 0
    %25 = vsyncpa [#allocation14], 0
    %26 = vsyncpa [#allocation6], 0
    %s27 = scalar_lea.sflag [#allocation6], 1
    %28 = vsyncpa %s27, 0
    loop: start=0, step=1, limit=6
    $region2: #{tpu_custom_call.1} parent=1 // loop_pre_header
      _
    $region3: #{tpu_custom_call.1} parent=1 // loop_header
      %s30 = sphi 0, %s34
      %p31 = scmp.ge.s32.totalorder %s30, 6
      %s37 = sphi 0, %s49
      %s38 = sphi 0, %s45
      %s39 = sphi 0, %s37
      %s40 = sphi 0, %s38
      %s41 = sphi 0, %s39
      %s42 = sphi 0, %s40
      %s54 = sphi 0, %s56
      %s57 = sphi 0, %s54
      %s58 = sphi 0, %s57
      %s74 = sphi 0, %s58
      %s80 = sphi 0, %s82
      %s83 = sphi 0, %s80
      %s84 = sphi 0, %s83
      %s100 = sphi 0, %s84
      %s106 = sphi 0, %s108
      %s109 = sphi 0, %s106
      %s110 = sphi 0, %s109
      %s126 = sphi 0, %s110
      %s130 = sphi 0, %s130
      %s132 = sphi 0, %s130
      %s133 = sphi 0, %s132
      %s147 = sphi 0, %s133
      %s151 = sphi 0, %s151
      %s153 = sphi 0, %s151
      %s154 = sphi 0, %s153
      %s168 = sphi 0, %s154
      %s172 = sphi 0, %s172
      %s174 = sphi 0, %s172
      %s175 = sphi 0, %s174
      %s189 = sphi 0, %s175
      %s193 = sphi 0, %s193
      %s195 = sphi 0, %s193
      %s196 = sphi 0, %s195
      %s210 = sphi 0, %s196
      %s214 = sphi 0, %s214
      %s216 = sphi 0, %s214
      %s217 = sphi 0, %s216
      %s231 = sphi 0, %s217
      %s235 = sphi 0, %s235
      %s237 = sphi 0, %s235
      %s238 = sphi 0, %s237
      %s252 = sphi 0, %s238
      %s256 = sphi 0, %s256
      %s258 = sphi 0, %s256
      %s259 = sphi 0, %s258
      %s273 = sphi 0, %s259
      %s277 = sphi 0, %s277
      %s279 = sphi 0, %s277
      %s280 = sphi 0, %s279
      %s294 = sphi 0, %s280
      %s298 = sphi 0, %s298
      %s300 = sphi 0, %s298
      %s301 = sphi 0, %s300
      %s315 = sphi 0, %s301
      %s319 = sphi 0, %s319
      %s321 = sphi 0, %s319
      %s322 = sphi 0, %s321
      %s336 = sphi 0, %s322
      %s344 = sphi 0, %s346
      %s347 = sphi 0, %s344
      %s348 = sphi 0, %s347
      %s364 = sphi 0, %s348
    $region4: #{tpu_custom_call.1} parent=1 // loop_header_branch
      %33 = sbr.rel (%p31) target = $region8
    $region5: #{tpu_custom_call.1} parent=1 // loop_body
      %s35 = ssub.s32 %s30, 1
      %s36 = ssub.s32 %s30, 2
      %s43 = sadd.s32 1, %s38
      %p44 = scmp.ge.s32.totalorder %s43, 2
      %s45 = scalar_select %p44, 0, %s43
      %s46 = sadd.s32 1, %s37
      %s47 = scalar_select %p44, %s46, %s37
      %p48 = scmp.ge.s32.totalorder %s47, 2
      %s49 = scalar_select %p48, 0, %s47
      %s50 = ssub.s32 %s37, %s49
      %s51 = ssub.s32 %s38, %s45
      %s52 = sor.u32 %s50, %s51
      %p53 = scmp.eq.s32.totalorder %s52, 0
      %s55 = sadd.s32 %s54, 1
      %s56 = scalar_select %p53, %s54, %s55
      %p59 = pneg %p53
      %p60 = scmp.eq.s32.totalorder %s30, 3
      %p61 = por %p59, %p60
      %p62 = scmp.ne.s32.totalorder %s54, %s57
      %p63 = scmp.eq.s32.totalorder %s30, 0
      %p64 = por %p62, %p63
      %p65 = scmp.ne.s32.totalorder %s54, %s57
      %p66 = scmp.eq.s32.totalorder %s35, 3
      %p67 = por %p65, %p66
      %p68 = scmp.ne.s32.totalorder %s57, %s58
      %p69 = scmp.eq.s32.totalorder %s35, 0
      %p70 = por %p68, %p69
      %p71 = scmp.ne.s32.totalorder %s57, %s58
      %p72 = scmp.eq.s32.totalorder %s36, 3
      %p73 = por %p71, %p72
      %p75 = scmp.ne.s32.totalorder %s58, %s74
      %p76 = scmp.eq.s32.totalorder %s36, 0
      %p77 = por %p75, %p76
      %s78 = ssub.s32 %s37, %s49
      %p79 = scmp.eq.s32.totalorder %s78, 0
      %s81 = sadd.s32 %s80, 1
      %s82 = scalar_select %p79, %s80, %s81
      %p85 = pneg %p79
      %p86 = scmp.eq.s32.totalorder %s30, 3
      %p87 = por %p85, %p86
      %p88 = scmp.ne.s32.totalorder %s80, %s83
      %p89 = scmp.eq.s32.totalorder %s30, 0
      %p90 = por %p88, %p89
      %p91 = scmp.ne.s32.totalorder %s80, %s83
      %p92 = scmp.eq.s32.totalorder %s35, 3
      %p93 = por %p91, %p92
      %p94 = scmp.ne.s32.totalorder %s83, %s84
      %p95 = scmp.eq.s32.totalorder %s35, 0
      %p96 = por %p94, %p95
      %p97 = scmp.ne.s32.totalorder %s83, %s84
      %p98 = scmp.eq.s32.totalorder %s36, 3
      %p99 = por %p97, %p98
      %p101 = scmp.ne.s32.totalorder %s84, %s100
      %p102 = scmp.eq.s32.totalorder %s36, 0
      %p103 = por %p101, %p102
      %s104 = ssub.s32 %s38, %s45
      %p105 = scmp.eq.s32.totalorder %s104, 0
      %s107 = sadd.s32 %s106, 1
      %s108 = scalar_select %p105, %s106, %s107
      %p111 = pneg %p105
      %p112 = scmp.eq.s32.totalorder %s30, 3
      %p113 = por %p111, %p112
      %p114 = scmp.ne.s32.totalorder %s106, %s109
      %p115 = scmp.eq.s32.totalorder %s30, 0
      %p116 = por %p114, %p115
      %p117 = scmp.ne.s32.totalorder %s106, %s109
      %p118 = scmp.eq.s32.totalorder %s35, 3
      %p119 = por %p117, %p118
      %p120 = scmp.ne.s32.totalorder %s109, %s110
      %p121 = scmp.eq.s32.totalorder %s35, 0
      %p122 = por %p120, %p121
      %p123 = scmp.ne.s32.totalorder %s109, %s110
      %p124 = scmp.eq.s32.totalorder %s36, 3
      %p125 = por %p123, %p124
      %p127 = scmp.ne.s32.totalorder %s110, %s126
      %p128 = scmp.eq.s32.totalorder %s36, 0
      %p129 = por %p127, %p128
      %s131 = sadd.s32 %s130, 1
      %p134 = scmp.eq.s32.totalorder %s30, 3
      %p135 = scmp.ne.s32.totalorder %s130, %s132
      %p136 = scmp.eq.s32.totalorder %s30, 0
      %p137 = por %p135, %p136
      %p138 = scmp.ne.s32.totalorder %s130, %s132
      %p139 = scmp.eq.s32.totalorder %s35, 3
      %p140 = por %p138, %p139
      %p141 = scmp.ne.s32.totalorder %s132, %s133
      %p142 = scmp.eq.s32.totalorder %s35, 0
      %p143 = por %p141, %p142
      %p144 = scmp.ne.s32.totalorder %s132, %s133
      %p145 = scmp.eq.s32.totalorder %s36, 3
      %p146 = por %p144, %p145
      %p148 = scmp.ne.s32.totalorder %s133, %s147
      %p149 = scmp.eq.s32.totalorder %s36, 0
      %p150 = por %p148, %p149
      %s152 = sadd.s32 %s151, 1
      %p155 = scmp.eq.s32.totalorder %s30, 3
      %p156 = scmp.ne.s32.totalorder %s151, %s153
      %p157 = scmp.eq.s32.totalorder %s30, 0
      %p158 = por %p156, %p157
      %p159 = scmp.ne.s32.totalorder %s151, %s153
      %p160 = scmp.eq.s32.totalorder %s35, 3
      %p161 = por %p159, %p160
      %p162 = scmp.ne.s32.totalorder %s153, %s154
      %p163 = scmp.eq.s32.totalorder %s35, 0
      %p164 = por %p162, %p163
      %p165 = scmp.ne.s32.totalorder %s153, %s154
      %p166 = scmp.eq.s32.totalorder %s36, 3
      %p167 = por %p165, %p166
      %p169 = scmp.ne.s32.totalorder %s154, %s168
      %p170 = scmp.eq.s32.totalorder %s36, 0
      %p171 = por %p169, %p170
      %s173 = sadd.s32 %s172, 1
      %p176 = scmp.eq.s32.totalorder %s30, 3
      %p177 = scmp.ne.s32.totalorder %s172, %s174
      %p178 = scmp.eq.s32.totalorder %s30, 0
      %p179 = por %p177, %p178
      %p180 = scmp.ne.s32.totalorder %s172, %s174
      %p181 = scmp.eq.s32.totalorder %s35, 3
      %p182 = por %p180, %p181
      %p183 = scmp.ne.s32.totalorder %s174, %s175
      %p184 = scmp.eq.s32.totalorder %s35, 0
      %p185 = por %p183, %p184
      %p186 = scmp.ne.s32.totalorder %s174, %s175
      %p187 = scmp.eq.s32.totalorder %s36, 3
      %p188 = por %p186, %p187
      %p190 = scmp.ne.s32.totalorder %s175, %s189
      %p191 = scmp.eq.s32.totalorder %s36, 0
      %p192 = por %p190, %p191
      %s194 = sadd.s32 %s193, 1
      %p197 = scmp.eq.s32.totalorder %s30, 3
      %p198 = scmp.ne.s32.totalorder %s193, %s195
      %p199 = scmp.eq.s32.totalorder %s30, 0
      %p200 = por %p198, %p199
      %p201 = scmp.ne.s32.totalorder %s193, %s195
      %p202 = scmp.eq.s32.totalorder %s35, 3
      %p203 = por %p201, %p202
      %p204 = scmp.ne.s32.totalorder %s195, %s196
      %p205 = scmp.eq.s32.totalorder %s35, 0
      %p206 = por %p204, %p205
      %p207 = scmp.ne.s32.totalorder %s195, %s196
      %p208 = scmp.eq.s32.totalorder %s36, 3
      %p209 = por %p207, %p208
      %p211 = scmp.ne.s32.totalorder %s196, %s210
      %p212 = scmp.eq.s32.totalorder %s36, 0
      %p213 = por %p211, %p212
      %s215 = sadd.s32 %s214, 1
      %p218 = scmp.eq.s32.totalorder %s30, 3
      %p219 = scmp.ne.s32.totalorder %s214, %s216
      %p220 = scmp.eq.s32.totalorder %s30, 0
      %p221 = por %p219, %p220
      %p222 = scmp.ne.s32.totalorder %s214, %s216
      %p223 = scmp.eq.s32.totalorder %s35, 3
      %p224 = por %p222, %p223
      %p225 = scmp.ne.s32.totalorder %s216, %s217
      %p226 = scmp.eq.s32.totalorder %s35, 0
      %p227 = por %p225, %p226
      %p228 = scmp.ne.s32.totalorder %s216, %s217
      %p229 = scmp.eq.s32.totalorder %s36, 3
      %p230 = por %p228, %p229
      %p232 = scmp.ne.s32.totalorder %s217, %s231
      %p233 = scmp.eq.s32.totalorder %s36, 0
      %p234 = por %p232, %p233
      %s236 = sadd.s32 %s235, 1
      %p239 = scmp.eq.s32.totalorder %s30, 3
      %p240 = scmp.ne.s32.totalorder %s235, %s237
      %p241 = scmp.eq.s32.totalorder %s30, 0
      %p242 = por %p240, %p241
      %p243 = scmp.ne.s32.totalorder %s235, %s237
      %p244 = scmp.eq.s32.totalorder %s35, 3
      %p245 = por %p243, %p244
      %p246 = scmp.ne.s32.totalorder %s237, %s238
      %p247 = scmp.eq.s32.totalorder %s35, 0
      %p248 = por %p246, %p247
      %p249 = scmp.ne.s32.totalorder %s237, %s238
      %p250 = scmp.eq.s32.totalorder %s36, 3
      %p251 = por %p249, %p250
      %p253 = scmp.ne.s32.totalorder %s238, %s252
      %p254 = scmp.eq.s32.totalorder %s36, 0
      %p255 = por %p253, %p254
      %s257 = sadd.s32 %s256, 1
      %p260 = scmp.eq.s32.totalorder %s30, 3
      %p261 = scmp.ne.s32.totalorder %s256, %s258
      %p262 = scmp.eq.s32.totalorder %s30, 0
      %p263 = por %p261, %p262
      %p264 = scmp.ne.s32.totalorder %s256, %s258
      %p265 = scmp.eq.s32.totalorder %s35, 3
      %p266 = por %p264, %p265
      %p267 = scmp.ne.s32.totalorder %s258, %s259
      %p268 = scmp.eq.s32.totalorder %s35, 0
      %p269 = por %p267, %p268
      %p270 = scmp.ne.s32.totalorder %s258, %s259
      %p271 = scmp.eq.s32.totalorder %s36, 3
      %p272 = por %p270, %p271
      %p274 = scmp.ne.s32.totalorder %s259, %s273
      %p275 = scmp.eq.s32.totalorder %s36, 0
      %p276 = por %p274, %p275
      %s278 = sadd.s32 %s277, 1
      %p281 = scmp.eq.s32.totalorder %s30, 3
      %p282 = scmp.ne.s32.totalorder %s277, %s279
      %p283 = scmp.eq.s32.totalorder %s30, 0
      %p284 = por %p282, %p283
      %p285 = scmp.ne.s32.totalorder %s277, %s279
      %p286 = scmp.eq.s32.totalorder %s35, 3
      %p287 = por %p285, %p286
      %p288 = scmp.ne.s32.totalorder %s279, %s280
      %p289 = scmp.eq.s32.totalorder %s35, 0
      %p290 = por %p288, %p289
      %p291 = scmp.ne.s32.totalorder %s279, %s280
      %p292 = scmp.eq.s32.totalorder %s36, 3
      %p293 = por %p291, %p292
      %p295 = scmp.ne.s32.totalorder %s280, %s294
      %p296 = scmp.eq.s32.totalorder %s36, 0
      %p297 = por %p295, %p296
      %s299 = sadd.s32 %s298, 1
      %p302 = scmp.eq.s32.totalorder %s30, 3
      %p303 = scmp.ne.s32.totalorder %s298, %s300
      %p304 = scmp.eq.s32.totalorder %s30, 0
      %p305 = por %p303, %p304
      %p306 = scmp.ne.s32.totalorder %s298, %s300
      %p307 = scmp.eq.s32.totalorder %s35, 3
      %p308 = por %p306, %p307
      %p309 = scmp.ne.s32.totalorder %s300, %s301
      %p310 = scmp.eq.s32.totalorder %s35, 0
      %p311 = por %p309, %p310
      %p312 = scmp.ne.s32.totalorder %s300, %s301
      %p313 = scmp.eq.s32.totalorder %s36, 3
      %p314 = por %p312, %p313
      %p316 = scmp.ne.s32.totalorder %s301, %s315
      %p317 = scmp.eq.s32.totalorder %s36, 0
      %p318 = por %p316, %p317
      %s320 = sadd.s32 %s319, 1
      %p323 = scmp.eq.s32.totalorder %s30, 3
      %p324 = scmp.ne.s32.totalorder %s319, %s321
      %p325 = scmp.eq.s32.totalorder %s30, 0
      %p326 = por %p324, %p325
      %p327 = scmp.ne.s32.totalorder %s319, %s321
      %p328 = scmp.eq.s32.totalorder %s35, 3
      %p329 = por %p327, %p328
      %p330 = scmp.ne.s32.totalorder %s321, %s322
      %p331 = scmp.eq.s32.totalorder %s35, 0
      %p332 = por %p330, %p331
      %p333 = scmp.ne.s32.totalorder %s321, %s322
      %p334 = scmp.eq.s32.totalorder %s36, 3
      %p335 = por %p333, %p334
      %p337 = scmp.ne.s32.totalorder %s322, %s336
      %p338 = scmp.eq.s32.totalorder %s36, 0
      %p339 = por %p337, %p338
      %s340 = ssub.s32 %s37, %s49
      %s341 = ssub.s32 %s38, %s45
      %s342 = sor.u32 %s340, %s341
      %p343 = scmp.eq.s32.totalorder %s342, 0
      %s345 = sadd.s32 %s344, 1
      %s346 = scalar_select %p343, %s344, %s345
      %p349 = pneg %p343
      %p350 = scmp.eq.s32.totalorder %s30, 3
      %p351 = por %p349, %p350
      %p352 = scmp.ne.s32.totalorder %s344, %s347
      %p353 = scmp.eq.s32.totalorder %s30, 0
      %p354 = por %p352, %p353
      %p355 = scmp.ne.s32.totalorder %s344, %s347
      %p356 = scmp.eq.s32.totalorder %s35, 3
      %p357 = por %p355, %p356
      %p358 = scmp.ne.s32.totalorder %s347, %s348
      %p359 = scmp.eq.s32.totalorder %s35, 0
      %p360 = por %p358, %p359
      %p361 = scmp.ne.s32.totalorder %s347, %s348
      %p362 = scmp.eq.s32.totalorder %s36, 3
      %p363 = por %p361, %p362
      %p365 = scmp.ne.s32.totalorder %s348, %s364
      %p366 = scmp.eq.s32.totalorder %s36, 0
      %p367 = por %p365, %p366
      %p368 = scmp.le.s32.totalorder 1, %s30
      %p369 = scmp.lt.s32.totalorder %s30, 5
      %p370 = pnand %p368, %p369
      %p371 = pneg %p370
      // Predicated region
      $region9: #{tpu_custom_call.1} parent=5 // pred_check
        _
      $region10: #{tpu_custom_call.1} parent=5 // pred_check_branch
        %373 = sbr.rel (%p370) target = $region12
      $region11: #{tpu_custom_call.1} parent=5 // pred_region
        %s374 = ssub.s32 %s30, 1
        // Predicated region
        $region13: #{tpu_custom_call.1} parent=11 // pred_check
          %p375 = pneg %p143
        $region14: #{tpu_custom_call.1} parent=11 // pred_check_branch
          %377 = sbr.rel (%p375) target = $region16
        $region15: #{tpu_custom_call.1} parent=11 // pred_region
          _
        $region16: #{tpu_custom_call.1} parent=11 // pred_fallthru
          _
        // Predicated region
        $region17: #{tpu_custom_call.1} parent=11 // pred_check
          %p378 = pneg %p164
        $region18: #{tpu_custom_call.1} parent=11 // pred_check_branch
          %380 = sbr.rel (%p378) target = $region20
        $region19: #{tpu_custom_call.1} parent=11 // pred_region
          _
        $region20: #{tpu_custom_call.1} parent=11 // pred_fallthru
          _
        // Predicated region
        $region21: #{tpu_custom_call.1} parent=11 // pred_check
          %p381 = pneg %p185
        $region22: #{tpu_custom_call.1} parent=11 // pred_check_branch
          %383 = sbr.rel (%p381) target = $region24
        $region23: #{tpu_custom_call.1} parent=11 // pred_region
          %s385 = ssub.s32 1024, 1024
          %386 = vsyncadd [#allocation8], %s385
          %s387 = sshll.u32 [#allocation9], 4
          %s388 = int_to_ptr.vmem [resolvable:$true] %s387
          %393 = dma.hbm_to_vmem [thread:$0]  %s5, 1024, %s388, [#allocation8], 64, 64, 4
        $region24: #{tpu_custom_call.1} parent=11 // pred_fallthru
          _
        // Predicated region
        $region25: #{tpu_custom_call.1} parent=11 // pred_check
          %p394 = pneg %p206
        $region26: #{tpu_custom_call.1} parent=11 // pred_check_branch
          %396 = sbr.rel (%p394) target = $region28
        $region27: #{tpu_custom_call.1} parent=11 // pred_region
          _
        $region28: #{tpu_custom_call.1} parent=11 // pred_fallthru
          _
        // Predicated region
        $region29: #{tpu_custom_call.1} parent=11 // pred_check
          %p397 = pneg %p227
        $region30: #{tpu_custom_call.1} parent=11 // pred_check_branch
          %399 = sbr.rel (%p397) target = $region32
        $region31: #{tpu_custom_call.1} parent=11 // pred_region
          %s401 = ssub.s32 1024, 1024
          %402 = vsyncadd [#allocation11], %s401
          %s403 = sshll.u32 [#allocation10], 4
          %s404 = int_to_ptr.vmem [resolvable:$true] %s403
          %409 = dma.hbm_to_vmem [thread:$0]  %s7, 1024, %s404, [#allocation11], 64, 64, 4
        $region32: #{tpu_custom_call.1} parent=11 // pred_fallthru
          _
        // Predicated region
        $region33: #{tpu_custom_call.1} parent=11 // pred_check
          %p410 = pneg %p248
        $region34: #{tpu_custom_call.1} parent=11 // pred_check_branch
          %412 = sbr.rel (%p410) target = $region36
        $region35: #{tpu_custom_call.1} parent=11 // pred_region
          _
        $region36: #{tpu_custom_call.1} parent=11 // pred_fallthru
          _
        // Predicated region
        $region37: #{tpu_custom_call.1} parent=11 // pred_check
          %p413 = pneg %p269
        $region38: #{tpu_custom_call.1} parent=11 // pred_check_branch
          %415 = sbr.rel (%p413) target = $region40
        $region39: #{tpu_custom_call.1} parent=11 // pred_region
          %s417 = ssub.s32 1024, 1024
          %418 = vsyncadd [#allocation11], %s417
          %s419 = sshll.u32 [#allocation12], 4
          %s420 = int_to_ptr.vmem [resolvable:$true] %s419
          %425 = dma.hbm_to_vmem [thread:$0]  %s9, 1024, %s420, [#allocation11], 64, 64, 4
        $region40: #{tpu_custom_call.1} parent=11 // pred_fallthru
          _
        // Predicated region
        $region41: #{tpu_custom_call.1} parent=11 // pred_check
          %p426 = pneg %p290
        $region42: #{tpu_custom_call.1} parent=11 // pred_check_branch
          %428 = sbr.rel (%p426) target = $region44
        $region43: #{tpu_custom_call.1} parent=11 // pred_region
          _
        $region44: #{tpu_custom_call.1} parent=11 // pred_fallthru
          _
        // Predicated region
        $region45: #{tpu_custom_call.1} parent=11 // pred_check
          %p429 = pneg %p311
        $region46: #{tpu_custom_call.1} parent=11 // pred_check_branch
          %431 = sbr.rel (%p429) target = $region48
        $region47: #{tpu_custom_call.1} parent=11 // pred_region
          %s433 = ssub.s32 1024, 1024
          %434 = vsyncadd [#allocation14], %s433
          %s435 = sshll.u32 [#allocation13], 4
          %s436 = int_to_ptr.vmem [resolvable:$true] %s435
          %441 = dma.hbm_to_vmem [thread:$0]  %s11, 1024, %s436, [#allocation14], 64, 64, 4
        $region48: #{tpu_custom_call.1} parent=11 // pred_fallthru
          _
        // Predicated region
        $region49: #{tpu_custom_call.1} parent=11 // pred_check
          %p442 = pneg %p332
        $region50: #{tpu_custom_call.1} parent=11 // pred_check_branch
          %444 = sbr.rel (%p442) target = $region52
        $region51: #{tpu_custom_call.1} parent=11 // pred_region
          _
        $region52: #{tpu_custom_call.1} parent=11 // pred_fallthru
          _
      $region12: #{tpu_custom_call.1} parent=5 // pred_fallthru
        _
      %p445 = scmp.lt.s32.totalorder %s30, 4
      // Predicated region
      $region53: #{tpu_custom_call.1} parent=5 // pred_check
        %p446 = pneg %p445
      $region54: #{tpu_custom_call.1} parent=5 // pred_check_branch
        %448 = sbr.rel (%p446) target = $region56
      $region55: #{tpu_custom_call.1} parent=5 // pred_region
        // Predicated region
        $region57: #{tpu_custom_call.1} parent=55 // pred_check
          %p449 = pneg %p64
        $region58: #{tpu_custom_call.1} parent=55 // pred_check_branch
          %451 = sbr.rel (%p449) target = $region60
        $region59: #{tpu_custom_call.1} parent=55 // pred_region
          %s452 = sand.u32 %s54, 1
          %s453 = scalar_lea.sflag [#allocation5], %s452
          %s454 = sand.u32 %s54, 1
          %s455 = smul.addr %s454, 8
          %s456 = scalar_lea.vmem [#allocation4], %s455
          %s458 = ssub.s32 128, 128
          %459 = vsyncadd %s453, %s458
          %s460 = smul.addr %s37, 2
          %s461 = sadd.s32 %s38, %s460
          %s462 = smul.addr %s461, 128
          %s463 = scalar_lea.hbm %s0, %s462
          %s465 = sshll.u32 %s456, 4
          %s466 = int_to_ptr.vmem [resolvable:$true] %s465
          %468 = dma.hbm_to_vmem [thread:$0]  %s463, 128, %s466, %s453
        $region60: #{tpu_custom_call.1} parent=55 // pred_fallthru
          _
        // Predicated region
        $region61: #{tpu_custom_call.1} parent=55 // pred_check
          %p469 = pneg %p90
        $region62: #{tpu_custom_call.1} parent=55 // pred_check_branch
          %471 = sbr.rel (%p469) target = $region64
        $region63: #{tpu_custom_call.1} parent=55 // pred_region
          %s472 = sand.u32 %s30, 1
          %s473 = scalar_lea.sflag [#allocation8], %s472
          %s474 = sand.u32 %s80, 1
          %s475 = smul.addr %s474, 16
          %s476 = scalar_lea.vmem [#allocation7], %s475
          %s478 = ssub.s32 256, 256
          %479 = vsyncadd %s473, %s478
          %s480 = smul.addr %s37, 2
          %s481 = smul.addr %s480, 128
          %s482 = scalar_lea.hbm %s1, %s481
          %s483 = sshll.u32 %s476, 4
          %s484 = int_to_ptr.vmem [resolvable:$true] %s483
          %489 = dma.hbm_to_vmem [thread:$0]  %s482, 256, %s484, %s473, 128, 128, 8
        $region64: #{tpu_custom_call.1} parent=55 // pred_fallthru
          _
        // Predicated region
        $region65: #{tpu_custom_call.1} parent=55 // pred_check
          %p490 = pneg %p116
        $region66: #{tpu_custom_call.1} parent=55 // pred_check_branch
          %492 = sbr.rel (%p490) target = $region68
        $region67: #{tpu_custom_call.1} parent=55 // pred_region
          %p493 = scmp.lt.s32.totalorder %s38, 1
          %s494 = scalar_select %p493, %s38, 1
          %s495 = smul.addr %s494, 2
          %s496 = scalar_lea.vmem %s2, %s495
        $region68: #{tpu_custom_call.1} parent=55 // pred_fallthru
          _
      $region56: #{tpu_custom_call.1} parent=5 // pred_fallthru
        _
      %p497 = scmp.le.s32.totalorder 1, %s30
      %p498 = scmp.lt.s32.totalorder %s30, 5
      %p499 = pnand %p497, %p498
      %p500 = pneg %p499
      // Predicated region
      $region69: #{tpu_custom_call.1} parent=5 // pred_check
        _
      $region70: #{tpu_custom_call.1} parent=5 // pred_check_branch
        %502 = sbr.rel (%p499) target = $region72
      $region71: #{tpu_custom_call.1} parent=5 // pred_region
        %s503 = ssub.s32 %s30, 1
        %s504 = sand.u32 %s57, 1
        %s505 = scalar_lea.sflag [#allocation5], %s504
        %s506 = sand.u32 %s57, 1
        %s507 = smul.addr %s506, 8
        %s508 = scalar_lea.vmem [#allocation4], %s507
        // Predicated region
        $region73: #{tpu_custom_call.1} parent=71 // pred_check
          %p509 = pneg %p70
        $region74: #{tpu_custom_call.1} parent=71 // pred_check_branch
          %511 = sbr.rel (%p509) target = $region76
        $region75: #{tpu_custom_call.1} parent=71 // pred_region
          %512 = dma.done %s505, 128
        $region76: #{tpu_custom_call.1} parent=71 // pred_fallthru
          _
        %s513 = sand.u32 %s35, 1
        %s514 = scalar_lea.sflag [#allocation8], %s513
        %s515 = sand.u32 %s83, 1
        %s516 = smul.addr %s515, 16
        %s517 = scalar_lea.vmem [#allocation7], %s516
        // Predicated region
        $region77: #{tpu_custom_call.1} parent=71 // pred_check
          %p518 = pneg %p96
        $region78: #{tpu_custom_call.1} parent=71 // pred_check_branch
          %520 = sbr.rel (%p518) target = $region80
        $region79: #{tpu_custom_call.1} parent=71 // pred_region
          %521 = dma.done %s514, 256
        $region80: #{tpu_custom_call.1} parent=71 // pred_fallthru
          _
        // Predicated region
        $region81: #{tpu_custom_call.1} parent=71 // pred_check
          %p522 = pneg %p185
        $region82: #{tpu_custom_call.1} parent=71 // pred_check_branch
          %524 = sbr.rel (%p522) target = $region84
        $region83: #{tpu_custom_call.1} parent=71 // pred_region
          %525 = dma.done [#allocation8], 1024
        $region84: #{tpu_custom_call.1} parent=71 // pred_fallthru
          _
        // Predicated region
        $region85: #{tpu_custom_call.1} parent=71 // pred_check
          %p526 = pneg %p227
        $region86: #{tpu_custom_call.1} parent=71 // pred_check_branch
          %528 = sbr.rel (%p526) target = $region88
        $region87: #{tpu_custom_call.1} parent=71 // pred_region
          %529 = dma.done [#allocation11], 1024
        $region88: #{tpu_custom_call.1} parent=71 // pred_fallthru
          _
        // Predicated region
        $region89: #{tpu_custom_call.1} parent=71 // pred_check
          %p530 = pneg %p269
        $region90: #{tpu_custom_call.1} parent=71 // pred_check_branch
          %532 = sbr.rel (%p530) target = $region92
        $region91: #{tpu_custom_call.1} parent=71 // pred_region
          %533 = dma.done [#allocation11], 1024
        $region92: #{tpu_custom_call.1} parent=71 // pred_fallthru
          _
        // Predicated region
        $region93: #{tpu_custom_call.1} parent=71 // pred_check
          %p534 = pneg %p311
        $region94: #{tpu_custom_call.1} parent=71 // pred_check_branch
          %536 = sbr.rel (%p534) target = $region96
        $region95: #{tpu_custom_call.1} parent=71 // pred_region
          %537 = dma.done [#allocation14], 1024
        $region96: #{tpu_custom_call.1} parent=71 // pred_fallthru
          _
        %s538 = sand.u32 %s57, 1
        %s539 = scalar_lea.sflag [#allocation5], %s538
        %s540 = sand.u32 %s57, 1
        %s541 = smul.addr %s540, 8
        %s542 = scalar_lea.vmem [#allocation4], %s541
        %p543 = pneg %p70
        %p544 = pneg %p67
        %s545 = sand.u32 %s35, 1
        %s546 = scalar_lea.sflag [#allocation8], %s545
        %s547 = sand.u32 %s83, 1
        %s548 = smul.addr %s547, 16
        %s549 = scalar_lea.vmem [#allocation7], %s548
        %p550 = pneg %p96
        %p551 = pneg %p93
        %p552 = scmp.lt.s32.totalorder %s40, 1
        %s553 = scalar_select %p552, %s40, 1
        %s554 = smul.addr %s553, 2
        %s555 = scalar_lea.vmem %s2, %s554
        %p556 = pneg %p122
        %p557 = pneg %p119
        %p558 = pneg %p143
        %p559 = pneg %p140
        %p560 = pneg %p164
        %p561 = pneg %p161
        %p562 = pneg %p185
        %p563 = pneg %p182
        %p564 = pneg %p206
        %p565 = pneg %p203
        %p566 = pneg %p227
        %p567 = pneg %p224
        %p568 = pneg %p248
        %p569 = pneg %p245
        %p570 = pneg %p269
        %p571 = pneg %p266
        %p572 = pneg %p290
        %p573 = pneg %p287
        %p574 = pneg %p311
        %p575 = pneg %p308
        %p576 = pneg %p332
        %p577 = pneg %p329
        %p578 = pneg %p360
        %p579 = pneg %p357
        %s580 = sand.u32 %s347, 1
        %s581 = scalar_lea.sflag [#allocation6], %s580
        %s582 = sand.u32 %s347, 1
        %s583 = smul.addr %s582, 8
        %s584 = scalar_lea.vmem [#allocation15], %s583
        %p585 = scmp.lt.s32.totalorder %s40, 1
        %s586 = scalar_select %p585, %s40, 1
        %s587 = smul.addr %s586, 2
        %s588 = scalar_lea.vmem %s2, %s587
        %v592 = vld [vmem:[%s3] sm:$0x1]
        %v593 = vld [vmem:[%s4] sm:$0x1]
        %p594 = scmp.eq.s32.totalorder %s40, 0
        // Predicated region
        $region97: #{tpu_custom_call.1} parent=71 // pred_check
          %p595 = pneg %p594
        $region98: #{tpu_custom_call.1} parent=71 // pred_check_branch
          %597 = sbr.rel (%p595) target = $region100
        $region99: #{tpu_custom_call.1} parent=71 // pred_region
          %v598 = vld [vmem:[%s517] sm:$0xff]
          %v599 = vld [vmem:[%s517 + $0x8] sm:$0xff]
          %600 = vadd.xlane.f32.xlu0 %v598
          %v601 = vpop.xlane.xlu0 %600
          %602 = vadd.xlane.f32.xlu0 %v599
          %v603 = vpop.xlane.xlu0 %602
          %v604 = vrcp.pop 128.0
          %v605 = vmul.f32 %v601, %v604
          %v606 = vmul.f32 %v603, %v604
          %v607 = vsub.f32 %v598, %v605
          %v608 = vsub.f32 %v599, %v606
          %v609 = vmul.f32 %v607, %v607
          %v610 = vmul.f32 %v608, %v608
          %611 = vadd.xlane.f32.xlu0 %v609
          %v612 = vpop.xlane.xlu0 %611
          %613 = vadd.xlane.f32.xlu0 %v610
          %v614 = vpop.xlane.xlu0 %613
          %v615 = vmul.f32 %v612, %v604
          %v616 = vmul.f32 %v614, %v604
          %v617 = vadd.f32 %v615, 1e-05
          %v618 = vadd.f32 %v616, 1e-05
          %v619 = vrsqrt.pop %v617
          %v620 = vrsqrt.pop %v618
          %v621 = vmul.f32 %v607, %v619
          %v622 = vmul.f32 %v608, %v620
          %v624 = vlaneseq
          %v625 = vshrl.u32 %v624, 7
          %v626 = vsub.s32 0, %v625
          %v627 = vrot.slane %v592, %v626
          %v629 = vmul.f32 %v621, %v627
          %v630 = vmul.f32 %v622, %v627
          %v632 = vlaneseq
          %v633 = vshrl.u32 %v632, 7
          %v634 = vsub.s32 0, %v633
          %v635 = vrot.slane %v593, %v634
          %v637 = vadd.f32 %v629, %v635
          %v638 = vadd.f32 %v630, %v635
          %v639 = vpack.c.bf16 %v638, %v637
          %v640 = vld [vmem:[#allocation10] sm:$0xf]
          %v641 = vld [vmem:[#allocation10 + $0x4] sm:$0xf]
          %v642 = vld [vmem:[#allocation10 + $0x8] sm:$0xf]
          %v643 = vld [vmem:[#allocation10 + $0xc] sm:$0xf]
          %v644 = vld [vmem:[#allocation10 + $0x10] sm:$0xf]
          %v645 = vld [vmem:[#allocation10 + $0x14] sm:$0xf]
          %v646 = vld [vmem:[#allocation10 + $0x18] sm:$0xf]
          %v647 = vld [vmem:[#allocation10 + $0x1c] sm:$0xf]
          %v648 = vld [vmem:[#allocation10 + $0x20] sm:$0xf]
          %v649 = vld [vmem:[#allocation10 + $0x24] sm:$0xf]
          %v650 = vld [vmem:[#allocation10 + $0x28] sm:$0xf]
          %v651 = vld [vmem:[#allocation10 + $0x2c] sm:$0xf]
          %v652 = vld [vmem:[#allocation10 + $0x30] sm:$0xf]
          %v653 = vld [vmem:[#allocation10 + $0x34] sm:$0xf]
          %v654 = vld [vmem:[#allocation10 + $0x38] sm:$0xf]
          %v655 = vld [vmem:[#allocation10 + $0x3c] sm:$0xf]
          %v656 = vld [vmem:[%s8] sm:$0x1]
          %v658 = vlaneseq
          %v659 = vshrl.u32 %v658, 7
          %v660 = vsub.s32 0, %v659
          %v661 = vrot.slane %v656, %v660
          %v679 = vunpack.c.l.b16 %v640
          %v680 = vunpack.c.l.b16 %v641
          %v681 = vunpack.c.l.b16 %v642
          %v682 = vunpack.c.l.b16 %v643
          %v683 = vunpack.c.l.b16 %v644
          %v684 = vunpack.c.l.b16 %v645
          %v685 = vunpack.c.l.b16 %v646
          %v686 = vunpack.c.l.b16 %v647
          %v687 = vunpack.c.l.b16 %v648
          %v688 = vunpack.c.l.b16 %v649
          %v689 = vunpack.c.l.b16 %v650
          %v690 = vunpack.c.l.b16 %v651
          %v691 = vunpack.c.l.b16 %v652
          %v692 = vunpack.c.l.b16 %v653
          %v693 = vunpack.c.l.b16 %v654
          %v694 = vunpack.c.l.b16 %v655
          %v695 = vpack.c.b16 %v680, %v679
          %v696 = vpack.c.b16 %v682, %v681
          %v697 = vpack.c.b16 %v684, %v683
          %v698 = vpack.c.b16 %v686, %v685
          %v699 = vpack.c.b16 %v688, %v687
          %v700 = vpack.c.b16 %v690, %v689
          %v701 = vpack.c.b16 %v692, %v691
          %v702 = vpack.c.b16 %v694, %v693
          %711 = vmatprep.subr.bf16.mxu0 0
          %712 = vmatpush1.bf16.msra.mxu0 %v695
          %713 = vmatprep.subr.bf16.mxu0 0
          %714 = vmatpush1.bf16.msra.mxu0 %v696
          %715 = vmatprep.subr.bf16.mxu0 0
          %716 = vmatpush1.bf16.msra.mxu0 %v697
          %717 = vmatprep.subr.bf16.mxu0 0
          %718 = vmatpush1.bf16.msra.mxu0 %v698
          %719 = vmatprep.subr.bf16.mxu0 0
          %720 = vmatpush1.bf16.msra.mxu0 %v699
          %721 = vmatprep.subr.bf16.mxu0 0
          %722 = vmatpush1.bf16.msra.mxu0 %v700
          %723 = vmatprep.subr.bf16.mxu0 0
          %724 = vmatpush1.bf16.msra.mxu0 %v701
          %725 = vmatprep.subr.bf16.mxu0 0
          %726 = vmatpush1.bf16.msra.mxu0 %v702
          %727 = vmatprep.subr.bf16.mxu0 0
          %728 = vmatpush1.bf16.msra.mxu0 0
          %729 = vmatprep.subr.bf16.mxu0 0
          %730 = vmatpush1.bf16.msra.mxu0 0
          %731 = vmatprep.subr.bf16.mxu0 0
          %732 = vmatpush1.bf16.msra.mxu0 0
          %733 = vmatprep.subr.bf16.mxu0 0
          %734 = vmatpush1.bf16.msra.mxu0 0
          %735 = vmatprep.subr.bf16.mxu0 0
          %736 = vmatpush1.bf16.msra.mxu0 0
          %737 = vmatprep.subr.bf16.mxu0 0
          %738 = vmatpush1.bf16.msra.mxu0 0
          %739 = vmatprep.subr.bf16.mxu0 0
          %740 = vmatpush1.bf16.msra.mxu0 0
          %741 = vmatprep.subr.bf16.mxu0 0
          %742 = vmatpush1.bf16.msra.mxu0 0
          %743 = vmatprep.mubr.bf16.mxu0 0
          %744 = vmatmul.mubr.bf16.gmra.mrb[0].mxu0 %v639
          %v745 = vpop.f32.mrb[0].mxu0
          %v746 = vadd.f32 %v661, %v745
          %v747 = vpop.f32.mrb[0].mxu0
          %v748 = vpop.f32.mrb[0].mxu0
          %v749 = vadd.f32 %v661, %v748
          %v750 = vpop.f32.mrb[0].mxu0
          %751 = vdwg.mxu0
          %v752 = vld [vmem:[#allocation12] sm:$0xf]
          %v753 = vld [vmem:[#allocation12 + $0x4] sm:$0xf]
          %v754 = vld [vmem:[#allocation12 + $0x8] sm:$0xf]
          %v755 = vld [vmem:[#allocation12 + $0xc] sm:$0xf]
          %v756 = vld [vmem:[#allocation12 + $0x10] sm:$0xf]
          %v757 = vld [vmem:[#allocation12 + $0x14] sm:$0xf]
          %v758 = vld [vmem:[#allocation12 + $0x18] sm:$0xf]
          %v759 = vld [vmem:[#allocation12 + $0x1c] sm:$0xf]
          %v760 = vld [vmem:[#allocation12 + $0x20] sm:$0xf]
          %v761 = vld [vmem:[#allocation12 + $0x24] sm:$0xf]
          %v762 = vld [vmem:[#allocation12 + $0x28] sm:$0xf]
          %v763 = vld [vmem:[#allocation12 + $0x2c] sm:$0xf]
          %v764 = vld [vmem:[#allocation12 + $0x30] sm:$0xf]
          %v765 = vld [vmem:[#allocation12 + $0x34] sm:$0xf]
          %v766 = vld [vmem:[#allocation12 + $0x38] sm:$0xf]
          %v767 = vld [vmem:[#allocation12 + $0x3c] sm:$0xf]
          %v768 = vld [vmem:[%s10] sm:$0x1]
          %v770 = vlaneseq
          %v771 = vshrl.u32 %v770, 7
          %v772 = vsub.s32 0, %v771
          %v773 = vrot.slane %v768, %v772
          %v791 = vunpack.c.l.b16 %v752
          %v792 = vunpack.c.l.b16 %v753
          %v793 = vunpack.c.l.b16 %v754
          %v794 = vunpack.c.l.b16 %v755
          %v795 = vunpack.c.l.b16 %v756
          %v796 = vunpack.c.l.b16 %v757
          %v797 = vunpack.c.l.b16 %v758
          %v798 = vunpack.c.l.b16 %v759
          %v799 = vunpack.c.l.b16 %v760
          %v800 = vunpack.c.l.b16 %v761
          %v801 = vunpack.c.l.b16 %v762
          %v802 = vunpack.c.l.b16 %v763
          %v803 = vunpack.c.l.b16 %v764
          %v804 = vunpack.c.l.b16 %v765
          %v805 = vunpack.c.l.b16 %v766
          %v806 = vunpack.c.l.b16 %v767
          %v807 = vpack.c.b16 %v792, %v791
          %v808 = vpack.c.b16 %v794, %v793
          %v809 = vpack.c.b16 %v796, %v795
          %v810 = vpack.c.b16 %v798, %v797
          %v811 = vpack.c.b16 %v800, %v799
          %v812 = vpack.c.b16 %v802, %v801
          %v813 = vpack.c.b16 %v804, %v803
          %v814 = vpack.c.b16 %v806, %v805
          %823 = vmatprep.subr.bf16.mxu0 0
          %824 = vmatpush1.bf16.msra.mxu0 %v807
          %825 = vmatprep.subr.bf16.mxu0 0
          %826 = vmatpush1.bf16.msra.mxu0 %v808
          %827 = vmatprep.subr.bf16.mxu0 0
          %828 = vmatpush1.bf16.msra.mxu0 %v809
          %829 = vmatprep.subr.bf16.mxu0 0
          %830 = vmatpush1.bf16.msra.mxu0 %v810
          %831 = vmatprep.subr.bf16.mxu0 0
          %832 = vmatpush1.bf16.msra.mxu0 %v811
          %833 = vmatprep.subr.bf16.mxu0 0
          %834 = vmatpush1.bf16.msra.mxu0 %v812
          %835 = vmatprep.subr.bf16.mxu0 0
          %836 = vmatpush1.bf16.msra.mxu0 %v813
          %837 = vmatprep.subr.bf16.mxu0 0
          %838 = vmatpush1.bf16.msra.mxu0 %v814
          %839 = vmatprep.subr.bf16.mxu0 0
          %840 = vmatpush1.bf16.msra.mxu0 0
          %841 = vmatprep.subr.bf16.mxu0 0
          %842 = vmatpush1.bf16.msra.mxu0 0
          %843 = vmatprep.subr.bf16.mxu0 0
          %844 = vmatpush1.bf16.msra.mxu0 0
          %845 = vmatprep.subr.bf16.mxu0 0
          %846 = vmatpush1.bf16.msra.mxu0 0
          %847 = vmatprep.subr.bf16.mxu0 0
          %848 = vmatpush1.bf16.msra.mxu0 0
          %849 = vmatprep.subr.bf16.mxu0 0
          %850 = vmatpush1.bf16.msra.mxu0 0
          %851 = vmatprep.subr.bf16.mxu0 0
          %852 = vmatpush1.bf16.msra.mxu0 0
          %853 = vmatprep.subr.bf16.mxu0 0
          %854 = vmatpush1.bf16.msra.mxu0 0
          %855 = vmatprep.mubr.bf16.mxu0 0
          %856 = vmatmul.mubr.bf16.gmra.mrb[0].mxu0 %v639
          %v857 = vpop.f32.mrb[0].mxu0
          %v858 = vadd.f32 %v773, %v857
          %v859 = vpop.f32.mrb[0].mxu0
          %v860 = vpop.f32.mrb[0].mxu0
          %v861 = vadd.f32 %v773, %v860
          %v862 = vpop.f32.mrb[0].mxu0
          %863 = vdwg.mxu0
          %866 = vrot.lane.b32.xlu0 %v746, 96
          %v867 = vpop.permute.xlu0 %866
          %868 = vrot.lane.b32.xlu0 %v749, 96
          %v869 = vpop.permute.xlu0 %868
          %872 = vrot.lane.b32.xlu0 %v746, 64
          %v873 = vpop.permute.xlu0 %872
          %874 = vrot.lane.b32.xlu0 %v749, 64
          %v875 = vpop.permute.xlu0 %874
          %878 = vrot.lane.b32.xlu0 %v746, 32
          %v879 = vpop.permute.xlu0 %878
          %880 = vrot.lane.b32.xlu0 %v749, 32
          %v881 = vpop.permute.xlu0 %880
          %v884 = vcombine.low %v746, %v873
          %v885 = vcombine.high %v746, %v873
          %v887 = vunpack.c.l.s4 1983009808
          %v888 = vunpack.c.0.s8 %v887
          %v889 = vlaneseq
          %v890 = vshrl.u32 %v889, 7
          %v891 = vsub.s32 %v888, %v890
          %v892 = vrot.slane %v884, %v891
          %v894 = vunpack.c.l.s4 1983009808
          %v895 = vunpack.c.0.s8 %v894
          %v896 = vlaneseq
          %v897 = vshrl.u32 %v896, 7
          %v898 = vsub.s32 %v895, %v897
          %v899 = vrot.slane %v885, %v898
          %v900 = vcombine.low %v867, %v879
          %v901 = vcombine.high %v867, %v879
          %v903 = vunpack.c.l.s4 1983009808
          %v904 = vunpack.c.0.s8 %v903
          %v905 = vlaneseq
          %v906 = vshrl.u32 %v905, 7
          %v907 = vsub.s32 %v904, %v906
          %v908 = vrot.slane %v900, %v907
          %v910 = vunpack.c.l.s4 1983009808
          %v911 = vunpack.c.0.s8 %v910
          %v912 = vlaneseq
          %v913 = vshrl.u32 %v912, 7
          %v914 = vsub.s32 %v911, %v913
          %v915 = vrot.slane %v901, %v914
          %v916 = vcombine.low %v892, %v908
          %v917 = vcombine.high %v892, %v908
          %v919 = vunpack.c.l.s4 1934713408
          %v920 = vunpack.c.0.s8 %v919
          %v921 = vlaneseq
          %v922 = vshrl.u32 %v921, 7
          %v923 = vsub.s32 %v920, %v922
          %v924 = vrot.slane %v916, %v923
          %v926 = vunpack.c.l.s4 1934713408
          %v927 = vunpack.c.0.s8 %v926
          %v928 = vlaneseq
          %v929 = vshrl.u32 %v928, 7
          %v930 = vsub.s32 %v927, %v929
          %v931 = vrot.slane %v917, %v930
          %v932 = vcombine.low %v899, %v915
          %v933 = vcombine.high %v899, %v915
          %v935 = vunpack.c.l.s4 1934713408
          %v936 = vunpack.c.0.s8 %v935
          %v937 = vlaneseq
          %v938 = vshrl.u32 %v937, 7
          %v939 = vsub.s32 %v936, %v938
          %v940 = vrot.slane %v932, %v939
          %v942 = vunpack.c.l.s4 1934713408
          %v943 = vunpack.c.0.s8 %v942
          %v944 = vlaneseq
          %v945 = vshrl.u32 %v944, 7
          %v946 = vsub.s32 %v943, %v945
          %v947 = vrot.slane %v933, %v946
          %v948 = vcombine.high %v924, 0.0
          %v949 = vcombine.high %v931, 0.0
          %v950 = vcombine.high %v940, 0.0
          %v951 = vcombine.high %v947, 0.0
          %v952 = vcombine.low %v749, %v875
          %v953 = vcombine.high %v749, %v875
          %v955 = vunpack.c.l.s4 1983009808
          %v956 = vunpack.c.0.s8 %v955
          %v957 = vlaneseq
          %v958 = vshrl.u32 %v957, 7
          %v959 = vsub.s32 %v956, %v958
          %v960 = vrot.slane %v952, %v959
          %v962 = vunpack.c.l.s4 1983009808
          %v963 = vunpack.c.0.s8 %v962
          %v964 = vlaneseq
          %v965 = vshrl.u32 %v964, 7
          %v966 = vsub.s32 %v963, %v965
          %v967 = vrot.slane %v953, %v966
          %v968 = vcombine.low %v869, %v881
          %v969 = vcombine.high %v869, %v881
          %v971 = vunpack.c.l.s4 1983009808
          %v972 = vunpack.c.0.s8 %v971
          %v973 = vlaneseq
          %v974 = vshrl.u32 %v973, 7
          %v975 = vsub.s32 %v972, %v974
          %v976 = vrot.slane %v968, %v975
          %v978 = vunpack.c.l.s4 1983009808
          %v979 = vunpack.c.0.s8 %v978
          %v980 = vlaneseq
          %v981 = vshrl.u32 %v980, 7
          %v982 = vsub.s32 %v979, %v981
          %v983 = vrot.slane %v969, %v982
          %v984 = vcombine.low %v960, %v976
          %v985 = vcombine.high %v960, %v976
          %v987 = vunpack.c.l.s4 1934713408
          %v988 = vunpack.c.0.s8 %v987
          %v989 = vlaneseq
          %v990 = vshrl.u32 %v989, 7
          %v991 = vsub.s32 %v988, %v990
          %v992 = vrot.slane %v984, %v991
          %v994 = vunpack.c.l.s4 1934713408
          %v995 = vunpack.c.0.s8 %v994
          %v996 = vlaneseq
          %v997 = vshrl.u32 %v996, 7
          %v998 = vsub.s32 %v995, %v997
          %v999 = vrot.slane %v985, %v998
          %v1000 = vcombine.low %v967, %v983
          %v1001 = vcombine.high %v967, %v983
          %v1003 = vunpack.c.l.s4 1934713408
          %v1004 = vunpack.c.0.s8 %v1003
          %v1005 = vlaneseq
          %v1006 = vshrl.u32 %v1005, 7
          %v1007 = vsub.s32 %v1004, %v1006
          %v1008 = vrot.slane %v1000, %v1007
          %v1010 = vunpack.c.l.s4 1934713408
          %v1011 = vunpack.c.0.s8 %v1010
          %v1012 = vlaneseq
          %v1013 = vshrl.u32 %v1012, 7
          %v1014 = vsub.s32 %v1011, %v1013
          %v1015 = vrot.slane %v1001, %v1014
          %v1016 = vcombine.high %v992, 0.0
          %v1017 = vcombine.high %v999, 0.0
          %v1018 = vcombine.high %v1008, 0.0
          %v1019 = vcombine.high %v1015, 0.0
          %v1020 = vcombine.low %v924, %v931
          %v1022 = vunpack.c.l.s4 1983009808
          %v1023 = vunpack.c.0.s8 %v1022
          %v1024 = vlaneseq
          %v1025 = vshrl.u32 %v1024, 7
          %v1026 = vsub.s32 %v1023, %v1025
          %v1027 = vrot.slane %v1020, %v1026
          %v1028 = vcombine.low %v948, %v949
          %v1030 = vunpack.c.l.s4 1983009808
          %v1031 = vunpack.c.0.s8 %v1030
          %v1032 = vlaneseq
          %v1033 = vshrl.u32 %v1032, 7
          %v1034 = vsub.s32 %v1031, %v1033
          %v1035 = vrot.slane %v1028, %v1034
          %v1036 = vcombine.low %v940, %v947
          %v1038 = vunpack.c.l.s4 1983009808
          %v1039 = vunpack.c.0.s8 %v1038
          %v1040 = vlaneseq
          %v1041 = vshrl.u32 %v1040, 7
          %v1042 = vsub.s32 %v1039, %v1041
          %v1043 = vrot.slane %v1036, %v1042
          %v1044 = vcombine.low %v950, %v951
          %v1046 = vunpack.c.l.s4 1983009808
          %v1047 = vunpack.c.0.s8 %v1046
          %v1048 = vlaneseq
          %v1049 = vshrl.u32 %v1048, 7
          %v1050 = vsub.s32 %v1047, %v1049
          %v1051 = vrot.slane %v1044, %v1050
          %v1052 = vcombine.low %v1027, %v1035
          %v1053 = vcombine.high %v1027, %v1035
          %v1055 = vunpack.c.l.s4 1934713408
          %v1056 = vunpack.c.0.s8 %v1055
          %v1057 = vlaneseq
          %v1058 = vshrl.u32 %v1057, 7
          %v1059 = vsub.s32 %v1056, %v1058
          %v1060 = vrot.slane %v1052, %v1059
          %v1062 = vunpack.c.l.s4 1934713408
          %v1063 = vunpack.c.0.s8 %v1062
          %v1064 = vlaneseq
          %v1065 = vshrl.u32 %v1064, 7
          %v1066 = vsub.s32 %v1063, %v1065
          %v1067 = vrot.slane %v1053, %v1066
          %v1068 = vcombine.low %v1043, %v1051
          %v1069 = vcombine.high %v1043, %v1051
          %v1071 = vunpack.c.l.s4 1934713408
          %v1072 = vunpack.c.0.s8 %v1071
          %v1073 = vlaneseq
          %v1074 = vshrl.u32 %v1073, 7
          %v1075 = vsub.s32 %v1072, %v1074
          %v1076 = vrot.slane %v1068, %v1075
          %v1078 = vunpack.c.l.s4 1934713408
          %v1079 = vunpack.c.0.s8 %v1078
          %v1080 = vlaneseq
          %v1081 = vshrl.u32 %v1080, 7
          %v1082 = vsub.s32 %v1079, %v1081
          %v1083 = vrot.slane %v1069, %v1082
          %v1084 = vcombine.low %v1060, %v1076
          %v1085 = vcombine.high %v1060, %v1076
          %v1086 = vcombine.low %v1067, %v1083
          %v1087 = vcombine.high %v1067, %v1083
          %v1088 = vcombine.low %v992, %v999
          %v1090 = vunpack.c.l.s4 1983009808
          %v1091 = vunpack.c.0.s8 %v1090
          %v1092 = vlaneseq
          %v1093 = vshrl.u32 %v1092, 7
          %v1094 = vsub.s32 %v1091, %v1093
          %v1095 = vrot.slane %v1088, %v1094
          %v1096 = vcombine.low %v1016, %v1017
          %v1098 = vunpack.c.l.s4 1983009808
          %v1099 = vunpack.c.0.s8 %v1098
          %v1100 = vlaneseq
          %v1101 = vshrl.u32 %v1100, 7
          %v1102 = vsub.s32 %v1099, %v1101
          %v1103 = vrot.slane %v1096, %v1102
          %v1104 = vcombine.low %v1008, %v1015
          %v1106 = vunpack.c.l.s4 1983009808
          %v1107 = vunpack.c.0.s8 %v1106
          %v1108 = vlaneseq
          %v1109 = vshrl.u32 %v1108, 7
          %v1110 = vsub.s32 %v1107, %v1109
          %v1111 = vrot.slane %v1104, %v1110
          %v1112 = vcombine.low %v1018, %v1019
          %v1114 = vunpack.c.l.s4 1983009808
          %v1115 = vunpack.c.0.s8 %v1114
          %v1116 = vlaneseq
          %v1117 = vshrl.u32 %v1116, 7
          %v1118 = vsub.s32 %v1115, %v1117
          %v1119 = vrot.slane %v1112, %v1118
          %v1120 = vcombine.low %v1095, %v1103
          %v1121 = vcombine.high %v1095, %v1103
          %v1123 = vunpack.c.l.s4 1934713408
          %v1124 = vunpack.c.0.s8 %v1123
          %v1125 = vlaneseq
          %v1126 = vshrl.u32 %v1125, 7
          %v1127 = vsub.s32 %v1124, %v1126
          %v1128 = vrot.slane %v1120, %v1127
          %v1130 = vunpack.c.l.s4 1934713408
          %v1131 = vunpack.c.0.s8 %v1130
          %v1132 = vlaneseq
          %v1133 = vshrl.u32 %v1132, 7
          %v1134 = vsub.s32 %v1131, %v1133
          %v1135 = vrot.slane %v1121, %v1134
          %v1136 = vcombine.low %v1111, %v1119
          %v1137 = vcombine.high %v1111, %v1119
          %v1139 = vunpack.c.l.s4 1934713408
          %v1140 = vunpack.c.0.s8 %v1139
          %v1141 = vlaneseq
          %v1142 = vshrl.u32 %v1141, 7
          %v1143 = vsub.s32 %v1140, %v1142
          %v1144 = vrot.slane %v1136, %v1143
          %v1146 = vunpack.c.l.s4 1934713408
          %v1147 = vunpack.c.0.s8 %v1146
          %v1148 = vlaneseq
          %v1149 = vshrl.u32 %v1148, 7
          %v1150 = vsub.s32 %v1147, %v1149
          %v1151 = vrot.slane %v1137, %v1150
          %v1152 = vcombine.low %v1128, %v1144
          %v1153 = vcombine.high %v1128, %v1144
          %v1154 = vcombine.low %v1135, %v1151
          %v1155 = vcombine.high %v1135, %v1151
          %v1156 = vpack.c.bf16 %v1152, %v1084
          %v1157 = vpack.c.bf16 %v1153, %v1085
          %v1158 = vpack.c.bf16 %v1154, %v1086
          %v1159 = vpack.c.bf16 %v1155, %v1087
          %vm1160 = vcmask 261120
          %1161 = vst.msk [vmem:[#allocation2] sm:$0xff] %vm1160, %v1156
          %1162 = vst.msk [vmem:[#allocation2 + $0x8] sm:$0xff] %vm1160, %v1157
          %1163 = vst.msk [vmem:[#allocation2 + $0x10] sm:$0xff] %vm1160, %v1158
          %1164 = vst.msk [vmem:[#allocation2 + $0x18] sm:$0xff] %vm1160, %v1159
          %1167 = vrot.lane.b32.xlu0 %v858, 96
          %v1168 = vpop.permute.xlu0 %1167
          %1169 = vrot.lane.b32.xlu0 %v861, 96
          %v1170 = vpop.permute.xlu0 %1169
          %1173 = vrot.lane.b32.xlu0 %v858, 64
          %v1174 = vpop.permute.xlu0 %1173
          %1175 = vrot.lane.b32.xlu0 %v861, 64
          %v1176 = vpop.permute.xlu0 %1175
          %1179 = vrot.lane.b32.xlu0 %v858, 32
          %v1180 = vpop.permute.xlu0 %1179
          %1181 = vrot.lane.b32.xlu0 %v861, 32
          %v1182 = vpop.permute.xlu0 %1181
          %v1185 = vcombine.low %v858, %v1174
          %v1186 = vcombine.high %v858, %v1174
          %v1188 = vunpack.c.l.s4 1983009808
          %v1189 = vunpack.c.0.s8 %v1188
          %v1190 = vlaneseq
          %v1191 = vshrl.u32 %v1190, 7
          %v1192 = vsub.s32 %v1189, %v1191
          %v1193 = vrot.slane %v1185, %v1192
          %v1195 = vunpack.c.l.s4 1983009808
          %v1196 = vunpack.c.0.s8 %v1195
          %v1197 = vlaneseq
          %v1198 = vshrl.u32 %v1197, 7
          %v1199 = vsub.s32 %v1196, %v1198
          %v1200 = vrot.slane %v1186, %v1199
          %v1201 = vcombine.low %v1168, %v1180
          %v1202 = vcombine.high %v1168, %v1180
          %v1204 = vunpack.c.l.s4 1983009808
          %v1205 = vunpack.c.0.s8 %v1204
          %v1206 = vlaneseq
          %v1207 = vshrl.u32 %v1206, 7
          %v1208 = vsub.s32 %v1205, %v1207
          %v1209 = vrot.slane %v1201, %v1208
          %v1211 = vunpack.c.l.s4 1983009808
          %v1212 = vunpack.c.0.s8 %v1211
          %v1213 = vlaneseq
          %v1214 = vshrl.u32 %v1213, 7
          %v1215 = vsub.s32 %v1212, %v1214
          %v1216 = vrot.slane %v1202, %v1215
          %v1217 = vcombine.low %v1193, %v1209
          %v1218 = vcombine.high %v1193, %v1209
          %v1220 = vunpack.c.l.s4 1934713408
          %v1221 = vunpack.c.0.s8 %v1220
          %v1222 = vlaneseq
          %v1223 = vshrl.u32 %v1222, 7
          %v1224 = vsub.s32 %v1221, %v1223
          %v1225 = vrot.slane %v1217, %v1224
          %v1227 = vunpack.c.l.s4 1934713408
          %v1228 = vunpack.c.0.s8 %v1227
          %v1229 = vlaneseq
          %v1230 = vshrl.u32 %v1229, 7
          %v1231 = vsub.s32 %v1228, %v1230
          %v1232 = vrot.slane %v1218, %v1231
          %v1233 = vcombine.low %v1200, %v1216
          %v1234 = vcombine.high %v1200, %v1216
          %v1236 = vunpack.c.l.s4 1934713408
          %v1237 = vunpack.c.0.s8 %v1236
          %v1238 = vlaneseq
          %v1239 = vshrl.u32 %v1238, 7
          %v1240 = vsub.s32 %v1237, %v1239
          %v1241 = vrot.slane %v1233, %v1240
          %v1243 = vunpack.c.l.s4 1934713408
          %v1244 = vunpack.c.0.s8 %v1243
          %v1245 = vlaneseq
          %v1246 = vshrl.u32 %v1245, 7
          %v1247 = vsub.s32 %v1244, %v1246
          %v1248 = vrot.slane %v1234, %v1247
          %v1249 = vcombine.high %v1225, 0.0
          %v1250 = vcombine.high %v1232, 0.0
          %v1251 = vcombine.high %v1241, 0.0
          %v1252 = vcombine.high %v1248, 0.0
          %v1253 = vcombine.low %v861, %v1176
          %v1254 = vcombine.high %v861, %v1176
          %v1256 = vunpack.c.l.s4 1983009808
          %v1257 = vunpack.c.0.s8 %v1256
          %v1258 = vlaneseq
          %v1259 = vshrl.u32 %v1258, 7
          %v1260 = vsub.s32 %v1257, %v1259
          %v1261 = vrot.slane %v1253, %v1260
          %v1263 = vunpack.c.l.s4 1983009808
          %v1264 = vunpack.c.0.s8 %v1263
          %v1265 = vlaneseq
          %v1266 = vshrl.u32 %v1265, 7
          %v1267 = vsub.s32 %v1264, %v1266
          %v1268 = vrot.slane %v1254, %v1267
          %v1269 = vcombine.low %v1170, %v1182
          %v1270 = vcombine.high %v1170, %v1182
          %v1272 = vunpack.c.l.s4 1983009808
          %v1273 = vunpack.c.0.s8 %v1272
          %v1274 = vlaneseq
          %v1275 = vshrl.u32 %v1274, 7
          %v1276 = vsub.s32 %v1273, %v1275
          %v1277 = vrot.slane %v1269, %v1276
          %v1279 = vunpack.c.l.s4 1983009808
          %v1280 = vunpack.c.0.s8 %v1279
          %v1281 = vlaneseq
          %v1282 = vshrl.u32 %v1281, 7
          %v1283 = vsub.s32 %v1280, %v1282
          %v1284 = vrot.slane %v1270, %v1283
          %v1285 = vcombine.low %v1261, %v1277
          %v1286 = vcombine.high %v1261, %v1277
          %v1288 = vunpack.c.l.s4 1934713408
          %v1289 = vunpack.c.0.s8 %v1288
          %v1290 = vlaneseq
          %v1291 = vshrl.u32 %v1290, 7
          %v1292 = vsub.s32 %v1289, %v1291
          %v1293 = vrot.slane %v1285, %v1292
          %v1295 = vunpack.c.l.s4 1934713408
          %v1296 = vunpack.c.0.s8 %v1295
          %v1297 = vlaneseq
          %v1298 = vshrl.u32 %v1297, 7
          %v1299 = vsub.s32 %v1296, %v1298
          %v1300 = vrot.slane %v1286, %v1299
          %v1301 = vcombine.low %v1268, %v1284
          %v1302 = vcombine.high %v1268, %v1284
          %v1304 = vunpack.c.l.s4 1934713408
          %v1305 = vunpack.c.0.s8 %v1304
          %v1306 = vlaneseq
          %v1307 = vshrl.u32 %v1306, 7
          %v1308 = vsub.s32 %v1305, %v1307
          %v1309 = vrot.slane %v1301, %v1308
          %v1311 = vunpack.c.l.s4 1934713408
          %v1312 = vunpack.c.0.s8 %v1311
          %v1313 = vlaneseq
          %v1314 = vshrl.u32 %v1313, 7
          %v1315 = vsub.s32 %v1312, %v1314
          %v1316 = vrot.slane %v1302, %v1315
          %v1317 = vcombine.high %v1293, 0.0
          %v1318 = vcombine.high %v1300, 0.0
          %v1319 = vcombine.high %v1309, 0.0
          %v1320 = vcombine.high %v1316, 0.0
          %v1321 = vcombine.low %v1225, %v1232
          %v1323 = vunpack.c.l.s4 1983009808
          %v1324 = vunpack.c.0.s8 %v1323
          %v1325 = vlaneseq
          %v1326 = vshrl.u32 %v1325, 7
          %v1327 = vsub.s32 %v1324, %v1326
          %v1328 = vrot.slane %v1321, %v1327
          %v1329 = vcombine.low %v1249, %v1250
          %v1331 = vunpack.c.l.s4 1983009808
          %v1332 = vunpack.c.0.s8 %v1331
          %v1333 = vlaneseq
          %v1334 = vshrl.u32 %v1333, 7
          %v1335 = vsub.s32 %v1332, %v1334
          %v1336 = vrot.slane %v1329, %v1335
          %v1337 = vcombine.low %v1241, %v1248
          %v1339 = vunpack.c.l.s4 1983009808
          %v1340 = vunpack.c.0.s8 %v1339
          %v1341 = vlaneseq
          %v1342 = vshrl.u32 %v1341, 7
          %v1343 = vsub.s32 %v1340, %v1342
          %v1344 = vrot.slane %v1337, %v1343
          %v1345 = vcombine.low %v1251, %v1252
          %v1347 = vunpack.c.l.s4 1983009808
          %v1348 = vunpack.c.0.s8 %v1347
          %v1349 = vlaneseq
          %v1350 = vshrl.u32 %v1349, 7
          %v1351 = vsub.s32 %v1348, %v1350
          %v1352 = vrot.slane %v1345, %v1351
          %v1353 = vcombine.low %v1328, %v1336
          %v1354 = vcombine.high %v1328, %v1336
          %v1356 = vunpack.c.l.s4 1934713408
          %v1357 = vunpack.c.0.s8 %v1356
          %v1358 = vlaneseq
          %v1359 = vshrl.u32 %v1358, 7
          %v1360 = vsub.s32 %v1357, %v1359
          %v1361 = vrot.slane %v1353, %v1360
          %v1363 = vunpack.c.l.s4 1934713408
          %v1364 = vunpack.c.0.s8 %v1363
          %v1365 = vlaneseq
          %v1366 = vshrl.u32 %v1365, 7
          %v1367 = vsub.s32 %v1364, %v1366
          %v1368 = vrot.slane %v1354, %v1367
          %v1369 = vcombine.low %v1344, %v1352
          %v1370 = vcombine.high %v1344, %v1352
          %v1372 = vunpack.c.l.s4 1934713408
          %v1373 = vunpack.c.0.s8 %v1372
          %v1374 = vlaneseq
          %v1375 = vshrl.u32 %v1374, 7
          %v1376 = vsub.s32 %v1373, %v1375
          %v1377 = vrot.slane %v1369, %v1376
          %v1379 = vunpack.c.l.s4 1934713408
          %v1380 = vunpack.c.0.s8 %v1379
          %v1381 = vlaneseq
          %v1382 = vshrl.u32 %v1381, 7
          %v1383 = vsub.s32 %v1380, %v1382
          %v1384 = vrot.slane %v1370, %v1383
          %v1385 = vcombine.low %v1361, %v1377
          %v1386 = vcombine.high %v1361, %v1377
          %v1387 = vcombine.low %v1368, %v1384
          %v1388 = vcombine.high %v1368, %v1384
          %v1389 = vcombine.low %v1293, %v1300
          %v1391 = vunpack.c.l.s4 1983009808
          %v1392 = vunpack.c.0.s8 %v1391
          %v1393 = vlaneseq
          %v1394 = vshrl.u32 %v1393, 7
          %v1395 = vsub.s32 %v1392, %v1394
          %v1396 = vrot.slane %v1389, %v1395
          %v1397 = vcombine.low %v1317, %v1318
          %v1399 = vunpack.c.l.s4 1983009808
          %v1400 = vunpack.c.0.s8 %v1399
          %v1401 = vlaneseq
          %v1402 = vshrl.u32 %v1401, 7
          %v1403 = vsub.s32 %v1400, %v1402
          %v1404 = vrot.slane %v1397, %v1403
          %v1405 = vcombine.low %v1309, %v1316
          %v1407 = vunpack.c.l.s4 1983009808
          %v1408 = vunpack.c.0.s8 %v1407
          %v1409 = vlaneseq
          %v1410 = vshrl.u32 %v1409, 7
          %v1411 = vsub.s32 %v1408, %v1410
          %v1412 = vrot.slane %v1405, %v1411
          %v1413 = vcombine.low %v1319, %v1320
          %v1415 = vunpack.c.l.s4 1983009808
          %v1416 = vunpack.c.0.s8 %v1415
          %v1417 = vlaneseq
          %v1418 = vshrl.u32 %v1417, 7
          %v1419 = vsub.s32 %v1416, %v1418
          %v1420 = vrot.slane %v1413, %v1419
          %v1421 = vcombine.low %v1396, %v1404
          %v1422 = vcombine.high %v1396, %v1404
          %v1424 = vunpack.c.l.s4 1934713408
          %v1425 = vunpack.c.0.s8 %v1424
          %v1426 = vlaneseq
          %v1427 = vshrl.u32 %v1426, 7
          %v1428 = vsub.s32 %v1425, %v1427
          %v1429 = vrot.slane %v1421, %v1428
          %v1431 = vunpack.c.l.s4 1934713408
          %v1432 = vunpack.c.0.s8 %v1431
          %v1433 = vlaneseq
          %v1434 = vshrl.u32 %v1433, 7
          %v1435 = vsub.s32 %v1432, %v1434
          %v1436 = vrot.slane %v1422, %v1435
          %v1437 = vcombine.low %v1412, %v1420
          %v1438 = vcombine.high %v1412, %v1420
          %v1440 = vunpack.c.l.s4 1934713408
          %v1441 = vunpack.c.0.s8 %v1440
          %v1442 = vlaneseq
          %v1443 = vshrl.u32 %v1442, 7
          %v1444 = vsub.s32 %v1441, %v1443
          %v1445 = vrot.slane %v1437, %v1444
          %v1447 = vunpack.c.l.s4 1934713408
          %v1448 = vunpack.c.0.s8 %v1447
          %v1449 = vlaneseq
          %v1450 = vshrl.u32 %v1449, 7
          %v1451 = vsub.s32 %v1448, %v1450
          %v1452 = vrot.slane %v1438, %v1451
          %v1453 = vcombine.low %v1429, %v1445
          %v1454 = vcombine.high %v1429, %v1445
          %v1455 = vcombine.low %v1436, %v1452
          %v1456 = vcombine.high %v1436, %v1452
          %v1457 = vpack.c.bf16 %v1453, %v1385
          %v1458 = vpack.c.bf16 %v1454, %v1386
          %v1459 = vpack.c.bf16 %v1455, %v1387
          %v1460 = vpack.c.bf16 %v1456, %v1388
          %1461 = vst.msk [vmem:[#allocation3] sm:$0xff] %vm1160, %v1457
          %1462 = vst.msk [vmem:[#allocation3 + $0x8] sm:$0xff] %vm1160, %v1458
          %1463 = vst.msk [vmem:[#allocation3 + $0x10] sm:$0xff] %vm1160, %v1459
          %1464 = vst.msk [vmem:[#allocation3 + $0x18] sm:$0xff] %vm1160, %v1460
        $region100: #{tpu_custom_call.1} parent=71 // pred_fallthru
          _
        %v1465 = vld [vmem:[%s508] sm:$0xff]
        %v1466 = vld [vmem:[%s588] sm:$0x3]
        %1467 = vadd.xlane.f32.xlu0 %v1465
        %v1468 = vpop.xlane.xlu0 %1467
        %v1469 = vrcp.pop 128.0
        %v1470 = vmul.f32 %v1468, %v1469
        %v1471 = vsub.f32 %v1465, %v1470
        %v1472 = vmul.f32 %v1471, %v1471
        %1473 = vadd.xlane.f32.xlu0 %v1472
        %v1474 = vpop.xlane.xlu0 %1473
        %v1475 = vmul.f32 %v1474, %v1469
        %v1476 = vadd.f32 %v1475, 1e-05
        %v1477 = vrsqrt.pop %v1476
        %v1478 = vmul.f32 %v1471, %v1477
        %v1480 = vlaneseq
        %v1481 = vshrl.u32 %v1480, 7
        %v1482 = vsub.s32 0, %v1481
        %v1483 = vrot.slane %v592, %v1482
        %v1485 = vmul.f32 %v1478, %v1483
        %v1487 = vlaneseq
        %v1488 = vshrl.u32 %v1487, 7
        %v1489 = vsub.s32 0, %v1488
        %v1490 = vrot.slane %v593, %v1489
        %v1492 = vadd.f32 %v1485, %v1490
        %v1493 = vpack.c.bf16 %v1492, %v1492
        %v1494 = vld [vmem:[#allocation9] sm:$0xf]
        %v1495 = vld [vmem:[#allocation9 + $0x4] sm:$0xf]
        %v1496 = vld [vmem:[#allocation9 + $0x8] sm:$0xf]
        %v1497 = vld [vmem:[#allocation9 + $0xc] sm:$0xf]
        %v1498 = vld [vmem:[#allocation9 + $0x10] sm:$0xf]
        %v1499 = vld [vmem:[#allocation9 + $0x14] sm:$0xf]
        %v1500 = vld [vmem:[#allocation9 + $0x18] sm:$0xf]
        %v1501 = vld [vmem:[#allocation9 + $0x1c] sm:$0xf]
        %v1502 = vld [vmem:[#allocation9 + $0x20] sm:$0xf]
        %v1503 = vld [vmem:[#allocation9 + $0x24] sm:$0xf]
        %v1504 = vld [vmem:[#allocation9 + $0x28] sm:$0xf]
        %v1505 = vld [vmem:[#allocation9 + $0x2c] sm:$0xf]
        %v1506 = vld [vmem:[#allocation9 + $0x30] sm:$0xf]
        %v1507 = vld [vmem:[#allocation9 + $0x34] sm:$0xf]
        %v1508 = vld [vmem:[#allocation9 + $0x38] sm:$0xf]
        %v1509 = vld [vmem:[#allocation9 + $0x3c] sm:$0xf]
        %v1510 = vld [vmem:[%s6] sm:$0x1]
        %v1512 = vlaneseq
        %v1513 = vshrl.u32 %v1512, 7
        %v1514 = vsub.s32 0, %v1513
        %v1515 = vrot.slane %v1510, %v1514
        %v1533 = vunpack.c.l.b16 %v1494
        %v1534 = vunpack.c.l.b16 %v1495
        %v1535 = vunpack.c.l.b16 %v1496
        %v1536 = vunpack.c.l.b16 %v1497
        %v1537 = vunpack.c.l.b16 %v1498
        %v1538 = vunpack.c.l.b16 %v1499
        %v1539 = vunpack.c.l.b16 %v1500
        %v1540 = vunpack.c.l.b16 %v1501
        %v1541 = vunpack.c.l.b16 %v1502
        %v1542 = vunpack.c.l.b16 %v1503
        %v1543 = vunpack.c.l.b16 %v1504
        %v1544 = vunpack.c.l.b16 %v1505
        %v1545 = vunpack.c.l.b16 %v1506
        %v1546 = vunpack.c.l.b16 %v1507
        %v1547 = vunpack.c.l.b16 %v1508
        %v1548 = vunpack.c.l.b16 %v1509
        %v1549 = vpack.c.b16 %v1534, %v1533
        %v1550 = vpack.c.b16 %v1536, %v1535
        %v1551 = vpack.c.b16 %v1538, %v1537
        %v1552 = vpack.c.b16 %v1540, %v1539
        %v1553 = vpack.c.b16 %v1542, %v1541
        %v1554 = vpack.c.b16 %v1544, %v1543
        %v1555 = vpack.c.b16 %v1546, %v1545
        %v1556 = vpack.c.b16 %v1548, %v1547
        %1565 = vmatprep.subr.bf16.mxu0 0
        %1566 = vmatpush1.bf16.msra.mxu0 %v1549
        %1567 = vmatprep.subr.bf16.mxu0 0
        %1568 = vmatpush1.bf16.msra.mxu0 %v1550
        %1569 = vmatprep.subr.bf16.mxu0 0
        %1570 = vmatpush1.bf16.msra.mxu0 %v1551
        %1571 = vmatprep.subr.bf16.mxu0 0
        %1572 = vmatpush1.bf16.msra.mxu0 %v1552
        %1573 = vmatprep.subr.bf16.mxu0 0
        %1574 = vmatpush1.bf16.msra.mxu0 %v1553
        %1575 = vmatprep.subr.bf16.mxu0 0
        %1576 = vmatpush1.bf16.msra.mxu0 %v1554
        %1577 = vmatprep.subr.bf16.mxu0 0
        %1578 = vmatpush1.bf16.msra.mxu0 %v1555
        %1579 = vmatprep.subr.bf16.mxu0 0
        %1580 = vmatpush1.bf16.msra.mxu0 %v1556
        %1581 = vmatprep.subr.bf16.mxu0 0
        %1582 = vmatpush1.bf16.msra.mxu0 0
        %1583 = vmatprep.subr.bf16.mxu0 0
        %1584 = vmatpush1.bf16.msra.mxu0 0
        %1585 = vmatprep.subr.bf16.mxu0 0
        %1586 = vmatpush1.bf16.msra.mxu0 0
        %1587 = vmatprep.subr.bf16.mxu0 0
        %1588 = vmatpush1.bf16.msra.mxu0 0
        %1589 = vmatprep.subr.bf16.mxu0 0
        %1590 = vmatpush1.bf16.msra.mxu0 0
        %1591 = vmatprep.subr.bf16.mxu0 0
        %1592 = vmatpush1.bf16.msra.mxu0 0
        %1593 = vmatprep.subr.bf16.mxu0 0
        %1594 = vmatpush1.bf16.msra.mxu0 0
        %1595 = vmatprep.subr.bf16.mxu0 0
        %1596 = vmatpush1.bf16.msra.mxu0 0
        %1597 = vmatprep.mubr.bf16.mxu0 0
        %1598 = vmatmul.mubr.bf16.gmra.mrb[0].mxu0 %v1493
        %v1599 = vpop.f32.mrb[0].mxu0
        %v1600 = vadd.f32 %v1515, %v1599
        %v1601 = vpop.f32.mrb[0].mxu0
        %v1602 = vpop.f32.mrb[0].mxu0
        %v1603 = vpop.f32.mrb[0].mxu0
        %1604 = vdwg.mxu0
        %v1605 = vmul.f32 %v1600, 0.17677669
        %1607 = vrot.lane.b32.xlu0 %v1605, 96
        %v1608 = vpop.permute.xlu0 %1607
        %1610 = vrot.lane.b32.xlu0 %v1605, 64
        %v1611 = vpop.permute.xlu0 %1610
        %1613 = vrot.lane.b32.xlu0 %v1605, 32
        %v1614 = vpop.permute.xlu0 %1613
        %v1616 = vcombine.low %v1605, %v1611
        %v1617 = vcombine.high %v1605, %v1611
        %v1619 = vunpack.c.l.s4 1983009808
        %v1620 = vunpack.c.0.s8 %v1619
        %v1621 = vlaneseq
        %v1622 = vshrl.u32 %v1621, 7
        %v1623 = vsub.s32 %v1620, %v1622
        %v1624 = vrot.slane %v1616, %v1623
        %v1626 = vunpack.c.l.s4 1983009808
        %v1627 = vunpack.c.0.s8 %v1626
        %v1628 = vlaneseq
        %v1629 = vshrl.u32 %v1628, 7
        %v1630 = vsub.s32 %v1627, %v1629
        %v1631 = vrot.slane %v1617, %v1630
        %v1632 = vcombine.low %v1608, %v1614
        %v1633 = vcombine.high %v1608, %v1614
        %v1635 = vunpack.c.l.s4 1983009808
        %v1636 = vunpack.c.0.s8 %v1635
        %v1637 = vlaneseq
        %v1638 = vshrl.u32 %v1637, 7
        %v1639 = vsub.s32 %v1636, %v1638
        %v1640 = vrot.slane %v1632, %v1639
        %v1642 = vunpack.c.l.s4 1983009808
        %v1643 = vunpack.c.0.s8 %v1642
        %v1644 = vlaneseq
        %v1645 = vshrl.u32 %v1644, 7
        %v1646 = vsub.s32 %v1643, %v1645
        %v1647 = vrot.slane %v1633, %v1646
        %v1648 = vcombine.low %v1624, %v1640
        %v1649 = vcombine.high %v1624, %v1640
        %v1651 = vunpack.c.l.s4 1934713408
        %v1652 = vunpack.c.0.s8 %v1651
        %v1653 = vlaneseq
        %v1654 = vshrl.u32 %v1653, 7
        %v1655 = vsub.s32 %v1652, %v1654
        %v1656 = vrot.slane %v1648, %v1655
        %v1658 = vunpack.c.l.s4 1934713408
        %v1659 = vunpack.c.0.s8 %v1658
        %v1660 = vlaneseq
        %v1661 = vshrl.u32 %v1660, 7
        %v1662 = vsub.s32 %v1659, %v1661
        %v1663 = vrot.slane %v1649, %v1662
        %v1664 = vcombine.low %v1631, %v1647
        %v1665 = vcombine.high %v1631, %v1647
        %v1667 = vunpack.c.l.s4 1934713408
        %v1668 = vunpack.c.0.s8 %v1667
        %v1669 = vlaneseq
        %v1670 = vshrl.u32 %v1669, 7
        %v1671 = vsub.s32 %v1668, %v1670
        %v1672 = vrot.slane %v1664, %v1671
        %v1674 = vunpack.c.l.s4 1934713408
        %v1675 = vunpack.c.0.s8 %v1674
        %v1676 = vlaneseq
        %v1677 = vshrl.u32 %v1676, 7
        %v1678 = vsub.s32 %v1675, %v1677
        %v1679 = vrot.slane %v1665, %v1678
        %v1680 = vcombine.high %v1656, 0.0
        %v1681 = vcombine.high %v1663, 0.0
        %v1682 = vcombine.high %v1672, 0.0
        %v1683 = vcombine.high %v1679, 0.0
        %v1684 = vcombine.low %v1656, %v1663
        %v1686 = vunpack.c.l.s4 1983009808
        %v1687 = vunpack.c.0.s8 %v1686
        %v1688 = vlaneseq
        %v1689 = vshrl.u32 %v1688, 7
        %v1690 = vsub.s32 %v1687, %v1689
        %v1691 = vrot.slane %v1684, %v1690
        %v1692 = vcombine.low %v1680, %v1681
        %v1694 = vunpack.c.l.s4 1983009808
        %v1695 = vunpack.c.0.s8 %v1694
        %v1696 = vlaneseq
        %v1697 = vshrl.u32 %v1696, 7
        %v1698 = vsub.s32 %v1695, %v1697
        %v1699 = vrot.slane %v1692, %v1698
        %v1700 = vcombine.low %v1672, %v1679
        %v1702 = vunpack.c.l.s4 1983009808
        %v1703 = vunpack.c.0.s8 %v1702
        %v1704 = vlaneseq
        %v1705 = vshrl.u32 %v1704, 7
        %v1706 = vsub.s32 %v1703, %v1705
        %v1707 = vrot.slane %v1700, %v1706
        %v1708 = vcombine.low %v1682, %v1683
        %v1710 = vunpack.c.l.s4 1983009808
        %v1711 = vunpack.c.0.s8 %v1710
        %v1712 = vlaneseq
        %v1713 = vshrl.u32 %v1712, 7
        %v1714 = vsub.s32 %v1711, %v1713
        %v1715 = vrot.slane %v1708, %v1714
        %v1716 = vcombine.low %v1691, %v1699
        %v1717 = vcombine.high %v1691, %v1699
        %v1719 = vunpack.c.l.s4 1934713408
        %v1720 = vunpack.c.0.s8 %v1719
        %v1721 = vlaneseq
        %v1722 = vshrl.u32 %v1721, 7
        %v1723 = vsub.s32 %v1720, %v1722
        %v1724 = vrot.slane %v1716, %v1723
        %v1726 = vunpack.c.l.s4 1934713408
        %v1727 = vunpack.c.0.s8 %v1726
        %v1728 = vlaneseq
        %v1729 = vshrl.u32 %v1728, 7
        %v1730 = vsub.s32 %v1727, %v1729
        %v1731 = vrot.slane %v1717, %v1730
        %v1732 = vcombine.low %v1707, %v1715
        %v1733 = vcombine.high %v1707, %v1715
        %v1735 = vunpack.c.l.s4 1934713408
        %v1736 = vunpack.c.0.s8 %v1735
        %v1737 = vlaneseq
        %v1738 = vshrl.u32 %v1737, 7
        %v1739 = vsub.s32 %v1736, %v1738
        %v1740 = vrot.slane %v1732, %v1739
        %v1742 = vunpack.c.l.s4 1934713408
        %v1743 = vunpack.c.0.s8 %v1742
        %v1744 = vlaneseq
        %v1745 = vshrl.u32 %v1744, 7
        %v1746 = vsub.s32 %v1743, %v1745
        %v1747 = vrot.slane %v1733, %v1746
        %v1748 = vcombine.low %v1724, %v1740
        %v1749 = vcombine.high %v1724, %v1740
        %v1750 = vcombine.low %v1731, %v1747
        %v1751 = vcombine.high %v1731, %v1747
        %v1752 = vpack.c.bf16 %v1748, %v1748
        %v1753 = vpack.c.bf16 %v1749, %v1749
        %v1754 = vpack.c.bf16 %v1750, %v1750
        %v1755 = vpack.c.bf16 %v1751, %v1751
        %v1756 = vld [vmem:[#allocation2] sm:$0xff]
        %v1757 = vld [vmem:[#allocation2 + $0x8] sm:$0xff]
        %v1758 = vld [vmem:[#allocation2 + $0x10] sm:$0xff]
        %v1759 = vld [vmem:[#allocation2 + $0x18] sm:$0xff]
        %vm1760 = vcmask 261120
        %v1762 = vsel %vm1760, %v1752, 0
        %v1765 = vsel %vm1760, %v1756, 0
        %1767 = vmatprep.subr.bf16.mxu0 0
        %1768 = vmatpush1.bf16.xpose.msra.mxu0 %v1765
        %1769 = vmatprep.subr.bf16.mxu0 0
        %1770 = vmatpush1.bf16.xpose.msra.mxu0 0
        %1771 = vmatprep.subr.bf16.mxu0 0
        %1772 = vmatpush1.bf16.xpose.msra.mxu0 0
        %1773 = vmatprep.subr.bf16.mxu0 0
        %1774 = vmatpush1.bf16.xpose.msra.mxu0 0
        %1775 = vmatprep.subr.bf16.mxu0 0
        %1776 = vmatpush1.bf16.xpose.msra.mxu0 0
        %1777 = vmatprep.subr.bf16.mxu0 0
        %1778 = vmatpush1.bf16.xpose.msra.mxu0 0
        %1779 = vmatprep.subr.bf16.mxu0 0
        %1780 = vmatpush1.bf16.xpose.msra.mxu0 0
        %1781 = vmatprep.subr.bf16.mxu0 0
        %1782 = vmatpush1.bf16.xpose.msra.mxu0 0
        %1783 = vmatprep.subr.bf16.mxu0 0
        %1784 = vmatpush1.bf16.xpose.msra.mxu0 0
        %1785 = vmatprep.subr.bf16.mxu0 0
        %1786 = vmatpush1.bf16.xpose.msra.mxu0 0
        %1787 = vmatprep.subr.bf16.mxu0 0
        %1788 = vmatpush1.bf16.xpose.msra.mxu0 0
        %1789 = vmatprep.subr.bf16.mxu0 0
        %1790 = vmatpush1.bf16.xpose.msra.mxu0 0
        %1791 = vmatprep.subr.bf16.mxu0 0
        %1792 = vmatpush1.bf16.xpose.msra.mxu0 0
        %1793 = vmatprep.subr.bf16.mxu0 0
        %1794 = vmatpush1.bf16.xpose.msra.mxu0 0
        %1795 = vmatprep.subr.bf16.mxu0 0
        %1796 = vmatpush1.bf16.xpose.msra.mxu0 0
        %1797 = vmatprep.subr.bf16.mxu0 0
        %1798 = vmatpush1.bf16.xpose.msra.mxu0 0
        %1799 = vmatprep.mubr.bf16.mxu0 0
        %1800 = vmatmul.mubr.bf16.gmra.mrb[0].mxu0 %v1762
        %v1801 = vpop.f32.mrb[0].mxu0
        %v1802 = vadd.f32 0.0, %v1801
        %v1803 = vpop.f32.mrb[0].mxu0
        %v1804 = vpop.f32.mrb[0].mxu0
        %v1805 = vpop.f32.mrb[0].mxu0
        %1806 = vdwg.mxu0
        %v1808 = vsel %vm1760, %v1753, 0
        %v1811 = vsel %vm1760, %v1757, 0
        %1813 = vmatprep.subr.bf16.mxu0 0
        %1814 = vmatpush1.bf16.xpose.msra.mxu0 %v1811
        %1815 = vmatprep.subr.bf16.mxu0 0
        %1816 = vmatpush1.bf16.xpose.msra.mxu0 0
        %1817 = vmatprep.subr.bf16.mxu0 0
        %1818 = vmatpush1.bf16.xpose.msra.mxu0 0
        %1819 = vmatprep.subr.bf16.mxu0 0
        %1820 = vmatpush1.bf16.xpose.msra.mxu0 0
        %1821 = vmatprep.subr.bf16.mxu0 0
        %1822 = vmatpush1.bf16.xpose.msra.mxu0 0
        %1823 = vmatprep.subr.bf16.mxu0 0
        %1824 = vmatpush1.bf16.xpose.msra.mxu0 0
        %1825 = vmatprep.subr.bf16.mxu0 0
        %1826 = vmatpush1.bf16.xpose.msra.mxu0 0
        %1827 = vmatprep.subr.bf16.mxu0 0
        %1828 = vmatpush1.bf16.xpose.msra.mxu0 0
        %1829 = vmatprep.subr.bf16.mxu0 0
        %1830 = vmatpush1.bf16.xpose.msra.mxu0 0
        %1831 = vmatprep.subr.bf16.mxu0 0
        %1832 = vmatpush1.bf16.xpose.msra.mxu0 0
        %1833 = vmatprep.subr.bf16.mxu0 0
        %1834 = vmatpush1.bf16.xpose.msra.mxu0 0
        %1835 = vmatprep.subr.bf16.mxu0 0
        %1836 = vmatpush1.bf16.xpose.msra.mxu0 0
        %1837 = vmatprep.subr.bf16.mxu0 0
        %1838 = vmatpush1.bf16.xpose.msra.mxu0 0
        %1839 = vmatprep.subr.bf16.mxu0 0
        %1840 = vmatpush1.bf16.xpose.msra.mxu0 0
        %1841 = vmatprep.subr.bf16.mxu0 0
        %1842 = vmatpush1.bf16.xpose.msra.mxu0 0
        %1843 = vmatprep.subr.bf16.mxu0 0
        %1844 = vmatpush1.bf16.xpose.msra.mxu0 0
        %1845 = vmatprep.mubr.bf16.mxu0 0
        %1846 = vmatmul.mubr.bf16.gmra.mrb[0].mxu0 %v1808
        %v1847 = vpop.f32.mrb[0].mxu0
        %v1848 = vadd.f32 0.0, %v1847
        %v1849 = vpop.f32.mrb[0].mxu0
        %v1850 = vpop.f32.mrb[0].mxu0
        %v1851 = vpop.f32.mrb[0].mxu0
        %1852 = vdwg.mxu0
        %v1854 = vsel %vm1760, %v1754, 0
        %v1857 = vsel %vm1760, %v1758, 0
        %1859 = vmatprep.subr.bf16.mxu0 0
        %1860 = vmatpush1.bf16.xpose.msra.mxu0 %v1857
        %1861 = vmatprep.subr.bf16.mxu0 0
        %1862 = vmatpush1.bf16.xpose.msra.mxu0 0
        %1863 = vmatprep.subr.bf16.mxu0 0
        %1864 = vmatpush1.bf16.xpose.msra.mxu0 0
        %1865 = vmatprep.subr.bf16.mxu0 0
        %1866 = vmatpush1.bf16.xpose.msra.mxu0 0
        %1867 = vmatprep.subr.bf16.mxu0 0
        %1868 = vmatpush1.bf16.xpose.msra.mxu0 0
        %1869 = vmatprep.subr.bf16.mxu0 0
        %1870 = vmatpush1.bf16.xpose.msra.mxu0 0
        %1871 = vmatprep.subr.bf16.mxu0 0
        %1872 = vmatpush1.bf16.xpose.msra.mxu0 0
        %1873 = vmatprep.subr.bf16.mxu0 0
        %1874 = vmatpush1.bf16.xpose.msra.mxu0 0
        %1875 = vmatprep.subr.bf16.mxu0 0
        %1876 = vmatpush1.bf16.xpose.msra.mxu0 0
        %1877 = vmatprep.subr.bf16.mxu0 0
        %1878 = vmatpush1.bf16.xpose.msra.mxu0 0
        %1879 = vmatprep.subr.bf16.mxu0 0
        %1880 = vmatpush1.bf16.xpose.msra.mxu0 0
        %1881 = vmatprep.subr.bf16.mxu0 0
        %1882 = vmatpush1.bf16.xpose.msra.mxu0 0
        %1883 = vmatprep.subr.bf16.mxu0 0
        %1884 = vmatpush1.bf16.xpose.msra.mxu0 0
        %1885 = vmatprep.subr.bf16.mxu0 0
        %1886 = vmatpush1.bf16.xpose.msra.mxu0 0
        %1887 = vmatprep.subr.bf16.mxu0 0
        %1888 = vmatpush1.bf16.xpose.msra.mxu0 0
        %1889 = vmatprep.subr.bf16.mxu0 0
        %1890 = vmatpush1.bf16.xpose.msra.mxu0 0
        %1891 = vmatprep.mubr.bf16.mxu0 0
        %1892 = vmatmul.mubr.bf16.gmra.mrb[0].mxu0 %v1854
        %v1893 = vpop.f32.mrb[0].mxu0
        %v1894 = vadd.f32 0.0, %v1893
        %v1895 = vpop.f32.mrb[0].mxu0
        %v1896 = vpop.f32.mrb[0].mxu0
        %v1897 = vpop.f32.mrb[0].mxu0
        %1898 = vdwg.mxu0
        %v1900 = vsel %vm1760, %v1755, 0
        %v1903 = vsel %vm1760, %v1759, 0
        %1905 = vmatprep.subr.bf16.mxu0 0
        %1906 = vmatpush1.bf16.xpose.msra.mxu0 %v1903
        %1907 = vmatprep.subr.bf16.mxu0 0
        %1908 = vmatpush1.bf16.xpose.msra.mxu0 0
        %1909 = vmatprep.subr.bf16.mxu0 0
        %1910 = vmatpush1.bf16.xpose.msra.mxu0 0
        %1911 = vmatprep.subr.bf16.mxu0 0
        %1912 = vmatpush1.bf16.xpose.msra.mxu0 0
        %1913 = vmatprep.subr.bf16.mxu0 0
        %1914 = vmatpush1.bf16.xpose.msra.mxu0 0
        %1915 = vmatprep.subr.bf16.mxu0 0
        %1916 = vmatpush1.bf16.xpose.msra.mxu0 0
        %1917 = vmatprep.subr.bf16.mxu0 0
        %1918 = vmatpush1.bf16.xpose.msra.mxu0 0
        %1919 = vmatprep.subr.bf16.mxu0 0
        %1920 = vmatpush1.bf16.xpose.msra.mxu0 0
        %1921 = vmatprep.subr.bf16.mxu0 0
        %1922 = vmatpush1.bf16.xpose.msra.mxu0 0
        %1923 = vmatprep.subr.bf16.mxu0 0
        %1924 = vmatpush1.bf16.xpose.msra.mxu0 0
        %1925 = vmatprep.subr.bf16.mxu0 0
        %1926 = vmatpush1.bf16.xpose.msra.mxu0 0
        %1927 = vmatprep.subr.bf16.mxu0 0
        %1928 = vmatpush1.bf16.xpose.msra.mxu0 0
        %1929 = vmatprep.subr.bf16.mxu0 0
        %1930 = vmatpush1.bf16.xpose.msra.mxu0 0
        %1931 = vmatprep.subr.bf16.mxu0 0
        %1932 = vmatpush1.bf16.xpose.msra.mxu0 0
        %1933 = vmatprep.subr.bf16.mxu0 0
        %1934 = vmatpush1.bf16.xpose.msra.mxu0 0
        %1935 = vmatprep.subr.bf16.mxu0 0
        %1936 = vmatpush1.bf16.xpose.msra.mxu0 0
        %1937 = vmatprep.mubr.bf16.mxu0 0
        %1938 = vmatmul.mubr.bf16.gmra.mrb[0].mxu0 %v1900
        %v1939 = vpop.f32.mrb[0].mxu0
        %v1940 = vadd.f32 0.0, %v1939
        %v1941 = vpop.f32.mrb[0].mxu0
        %v1942 = vpop.f32.mrb[0].mxu0
        %v1943 = vpop.f32.mrb[0].mxu0
        %1944 = vdwg.mxu0
        %vm1945 = vnez %v1466
        %v1946 = vsel %vm1945, 16843009, 0
        %v1947 = vunpack.c.0.s8 %v1946
        %vm1948 = vcmp.ne.s32.totalorder %v1947, 0
        %v1949 = vsel %vm1948, 1, 0
        %vm1950 = vcmp.eq.s32.totalorder %v1949, 1
        %v1951 = vsel %vm1950, 1e-09, %v1802
        %v1952 = vsel %vm1950, 1e-09, %v1848
        %v1953 = vsel %vm1950, 1e-09, %v1894
        %v1954 = vsel %vm1950, 1e-09, %v1940
        %vm1955 = vcmask 130048
        %v1956 = vsel %vm1955, %v1951, -inf
        %1957 = vmax.xlane.f32.xlu0 %v1956
        %v1958 = vpop.xlane.xlu0 %1957
        %v1959 = vsel %vm1955, %v1952, -inf
        %1960 = vmax.xlane.f32.xlu0 %v1959
        %v1961 = vpop.xlane.xlu0 %1960
        %v1962 = vsel %vm1955, %v1953, -inf
        %1963 = vmax.xlane.f32.xlu0 %v1962
        %v1964 = vpop.xlane.xlu0 %1963
        %v1965 = vsel %vm1955, %v1954, -inf
        %1966 = vmax.xlane.f32.xlu0 %v1965
        %v1967 = vpop.xlane.xlu0 %1966
        %v1968 = vsub.f32 %v1951, %v1958
        %v1969 = vsub.f32 %v1952, %v1961
        %v1970 = vsub.f32 %v1953, %v1964
        %v1971 = vsub.f32 %v1954, %v1967
        %v1972 = vmul.f32 %v1968, 1.442695
        %v1973 = vpow.pop %v1972
        %v1974 = vmul.f32 %v1969, 1.442695
        %v1975 = vpow.pop %v1974
        %v1976 = vmul.f32 %v1970, 1.442695
        %v1977 = vpow.pop %v1976
        %v1978 = vmul.f32 %v1971, 1.442695
        %v1979 = vpow.pop %v1978
        %v1980 = vsel %vm1955, %v1973, 0.0
        %1981 = vadd.xlane.f32.xlu0 %v1980
        %v1982 = vpop.xlane.xlu0 %1981
        %v1983 = vsel %vm1955, %v1975, 0.0
        %1984 = vadd.xlane.f32.xlu0 %v1983
        %v1985 = vpop.xlane.xlu0 %1984
        %v1986 = vsel %vm1955, %v1977, 0.0
        %1987 = vadd.xlane.f32.xlu0 %v1986
        %v1988 = vpop.xlane.xlu0 %1987
        %v1989 = vsel %vm1955, %v1979, 0.0
        %1990 = vadd.xlane.f32.xlu0 %v1989
        %v1991 = vpop.xlane.xlu0 %1990
        %v1992 = vrcp.pop %v1982
        %v1993 = vrcp.pop %v1985
        %v1994 = vrcp.pop %v1988
        %v1995 = vrcp.pop %v1991
        %v1996 = vmul.f32 %v1973, %v1992
        %v1997 = vmul.f32 %v1975, %v1993
        %v1998 = vmul.f32 %v1977, %v1994
        %v1999 = vmul.f32 %v1979, %v1995
        %v2000 = vpack.c.bf16 %v1996, %v1996
        %v2001 = vpack.c.bf16 %v1997, %v1997
        %v2002 = vpack.c.bf16 %v1998, %v1998
        %v2003 = vpack.c.bf16 %v1999, %v1999
        %v2004 = vld [vmem:[#allocation3] sm:$0xff]
        %v2005 = vld [vmem:[#allocation3 + $0x8] sm:$0xff]
        %v2006 = vld [vmem:[#allocation3 + $0x10] sm:$0xff]
        %v2007 = vld [vmem:[#allocation3 + $0x18] sm:$0xff]
        %v2009 = vsel %vm1955, %v2000, 0
        %2011 = vmatprep.subr.bf16.mxu0 0
        %2012 = vmatpush1.bf16.msra.mxu0 %v2004
        %2013 = vmatprep.subr.bf16.mxu0 0
        %2014 = vmatpush1.bf16.msra.mxu0 0
        %2015 = vmatprep.subr.bf16.mxu0 0
        %2016 = vmatpush1.bf16.msra.mxu0 0
        %2017 = vmatprep.subr.bf16.mxu0 0
        %2018 = vmatpush1.bf16.msra.mxu0 0
        %2019 = vmatprep.subr.bf16.mxu0 0
        %2020 = vmatpush1.bf16.msra.mxu0 0
        %2021 = vmatprep.subr.bf16.mxu0 0
        %2022 = vmatpush1.bf16.msra.mxu0 0
        %2023 = vmatprep.subr.bf16.mxu0 0
        %2024 = vmatpush1.bf16.msra.mxu0 0
        %2025 = vmatprep.subr.bf16.mxu0 0
        %2026 = vmatpush1.bf16.msra.mxu0 0
        %2027 = vmatprep.subr.bf16.mxu0 0
        %2028 = vmatpush1.bf16.msra.mxu0 0
        %2029 = vmatprep.subr.bf16.mxu0 0
        %2030 = vmatpush1.bf16.msra.mxu0 0
        %2031 = vmatprep.subr.bf16.mxu0 0
        %2032 = vmatpush1.bf16.msra.mxu0 0
        %2033 = vmatprep.subr.bf16.mxu0 0
        %2034 = vmatpush1.bf16.msra.mxu0 0
        %2035 = vmatprep.subr.bf16.mxu0 0
        %2036 = vmatpush1.bf16.msra.mxu0 0
        %2037 = vmatprep.subr.bf16.mxu0 0
        %2038 = vmatpush1.bf16.msra.mxu0 0
        %2039 = vmatprep.subr.bf16.mxu0 0
        %2040 = vmatpush1.bf16.msra.mxu0 0
        %2041 = vmatprep.subr.bf16.mxu0 0
        %2042 = vmatpush1.bf16.msra.mxu0 0
        %2043 = vmatprep.mubr.bf16.mxu0 0
        %2044 = vmatmul.mubr.bf16.gmra.mrb[0].mxu0 %v2009
        %v2045 = vpop.f32.mrb[0].mxu0
        %v2046 = vadd.f32 0.0, %v2045
        %v2047 = vpop.f32.mrb[0].mxu0
        %v2048 = vpop.f32.mrb[0].mxu0
        %v2049 = vpop.f32.mrb[0].mxu0
        %2050 = vdwg.mxu0
        %v2052 = vsel %vm1955, %v2001, 0
        %2054 = vmatprep.subr.bf16.mxu0 0
        %2055 = vmatpush1.bf16.msra.mxu0 %v2005
        %2056 = vmatprep.subr.bf16.mxu0 0
        %2057 = vmatpush1.bf16.msra.mxu0 0
        %2058 = vmatprep.subr.bf16.mxu0 0
        %2059 = vmatpush1.bf16.msra.mxu0 0
        %2060 = vmatprep.subr.bf16.mxu0 0
        %2061 = vmatpush1.bf16.msra.mxu0 0
        %2062 = vmatprep.subr.bf16.mxu0 0
        %2063 = vmatpush1.bf16.msra.mxu0 0
        %2064 = vmatprep.subr.bf16.mxu0 0
        %2065 = vmatpush1.bf16.msra.mxu0 0
        %2066 = vmatprep.subr.bf16.mxu0 0
        %2067 = vmatpush1.bf16.msra.mxu0 0
        %2068 = vmatprep.subr.bf16.mxu0 0
        %2069 = vmatpush1.bf16.msra.mxu0 0
        %2070 = vmatprep.subr.bf16.mxu0 0
        %2071 = vmatpush1.bf16.msra.mxu0 0
        %2072 = vmatprep.subr.bf16.mxu0 0
        %2073 = vmatpush1.bf16.msra.mxu0 0
        %2074 = vmatprep.subr.bf16.mxu0 0
        %2075 = vmatpush1.bf16.msra.mxu0 0
        %2076 = vmatprep.subr.bf16.mxu0 0
        %2077 = vmatpush1.bf16.msra.mxu0 0
        %2078 = vmatprep.subr.bf16.mxu0 0
        %2079 = vmatpush1.bf16.msra.mxu0 0
        %2080 = vmatprep.subr.bf16.mxu0 0
        %2081 = vmatpush1.bf16.msra.mxu0 0
        %2082 = vmatprep.subr.bf16.mxu0 0
        %2083 = vmatpush1.bf16.msra.mxu0 0
        %2084 = vmatprep.subr.bf16.mxu0 0
        %2085 = vmatpush1.bf16.msra.mxu0 0
        %2086 = vmatprep.mubr.bf16.mxu0 0
        %2087 = vmatmul.mubr.bf16.gmra.mrb[0].mxu0 %v2052
        %v2088 = vpop.f32.mrb[0].mxu0
        %v2089 = vadd.f32 0.0, %v2088
        %v2090 = vpop.f32.mrb[0].mxu0
        %v2091 = vpop.f32.mrb[0].mxu0
        %v2092 = vpop.f32.mrb[0].mxu0
        %2093 = vdwg.mxu0
        %v2095 = vsel %vm1955, %v2002, 0
        %2097 = vmatprep.subr.bf16.mxu0 0
        %2098 = vmatpush1.bf16.msra.mxu0 %v2006
        %2099 = vmatprep.subr.bf16.mxu0 0
        %2100 = vmatpush1.bf16.msra.mxu0 0
        %2101 = vmatprep.subr.bf16.mxu0 0
        %2102 = vmatpush1.bf16.msra.mxu0 0
        %2103 = vmatprep.subr.bf16.mxu0 0
        %2104 = vmatpush1.bf16.msra.mxu0 0
        %2105 = vmatprep.subr.bf16.mxu0 0
        %2106 = vmatpush1.bf16.msra.mxu0 0
        %2107 = vmatprep.subr.bf16.mxu0 0
        %2108 = vmatpush1.bf16.msra.mxu0 0
        %2109 = vmatprep.subr.bf16.mxu0 0
        %2110 = vmatpush1.bf16.msra.mxu0 0
        %2111 = vmatprep.subr.bf16.mxu0 0
        %2112 = vmatpush1.bf16.msra.mxu0 0
        %2113 = vmatprep.subr.bf16.mxu0 0
        %2114 = vmatpush1.bf16.msra.mxu0 0
        %2115 = vmatprep.subr.bf16.mxu0 0
        %2116 = vmatpush1.bf16.msra.mxu0 0
        %2117 = vmatprep.subr.bf16.mxu0 0
        %2118 = vmatpush1.bf16.msra.mxu0 0
        %2119 = vmatprep.subr.bf16.mxu0 0
        %2120 = vmatpush1.bf16.msra.mxu0 0
        %2121 = vmatprep.subr.bf16.mxu0 0
        %2122 = vmatpush1.bf16.msra.mxu0 0
        %2123 = vmatprep.subr.bf16.mxu0 0
        %2124 = vmatpush1.bf16.msra.mxu0 0
        %2125 = vmatprep.subr.bf16.mxu0 0
        %2126 = vmatpush1.bf16.msra.mxu0 0
        %2127 = vmatprep.subr.bf16.mxu0 0
        %2128 = vmatpush1.bf16.msra.mxu0 0
        %2129 = vmatprep.mubr.bf16.mxu0 0
        %2130 = vmatmul.mubr.bf16.gmra.mrb[0].mxu0 %v2095
        %v2131 = vpop.f32.mrb[0].mxu0
        %v2132 = vadd.f32 0.0, %v2131
        %v2133 = vpop.f32.mrb[0].mxu0
        %v2134 = vpop.f32.mrb[0].mxu0
        %v2135 = vpop.f32.mrb[0].mxu0
        %2136 = vdwg.mxu0
        %v2138 = vsel %vm1955, %v2003, 0
        %2140 = vmatprep.subr.bf16.mxu0 0
        %2141 = vmatpush1.bf16.msra.mxu0 %v2007
        %2142 = vmatprep.subr.bf16.mxu0 0
        %2143 = vmatpush1.bf16.msra.mxu0 0
        %2144 = vmatprep.subr.bf16.mxu0 0
        %2145 = vmatpush1.bf16.msra.mxu0 0
        %2146 = vmatprep.subr.bf16.mxu0 0
        %2147 = vmatpush1.bf16.msra.mxu0 0
        %2148 = vmatprep.subr.bf16.mxu0 0
        %2149 = vmatpush1.bf16.msra.mxu0 0
        %2150 = vmatprep.subr.bf16.mxu0 0
        %2151 = vmatpush1.bf16.msra.mxu0 0
        %2152 = vmatprep.subr.bf16.mxu0 0
        %2153 = vmatpush1.bf16.msra.mxu0 0
        %2154 = vmatprep.subr.bf16.mxu0 0
        %2155 = vmatpush1.bf16.msra.mxu0 0
        %2156 = vmatprep.subr.bf16.mxu0 0
        %2157 = vmatpush1.bf16.msra.mxu0 0
        %2158 = vmatprep.subr.bf16.mxu0 0
        %2159 = vmatpush1.bf16.msra.mxu0 0
        %2160 = vmatprep.subr.bf16.mxu0 0
        %2161 = vmatpush1.bf16.msra.mxu0 0
        %2162 = vmatprep.subr.bf16.mxu0 0
        %2163 = vmatpush1.bf16.msra.mxu0 0
        %2164 = vmatprep.subr.bf16.mxu0 0
        %2165 = vmatpush1.bf16.msra.mxu0 0
        %2166 = vmatprep.subr.bf16.mxu0 0
        %2167 = vmatpush1.bf16.msra.mxu0 0
        %2168 = vmatprep.subr.bf16.mxu0 0
        %2169 = vmatpush1.bf16.msra.mxu0 0
        %2170 = vmatprep.subr.bf16.mxu0 0
        %2171 = vmatpush1.bf16.msra.mxu0 0
        %2172 = vmatprep.mubr.bf16.mxu0 0
        %2173 = vmatmul.mubr.bf16.gmra.mrb[0].mxu0 %v2138
        %v2174 = vpop.f32.mrb[0].mxu0
        %v2175 = vadd.f32 0.0, %v2174
        %v2176 = vpop.f32.mrb[0].mxu0
        %v2177 = vpop.f32.mrb[0].mxu0
        %v2178 = vpop.f32.mrb[0].mxu0
        %2179 = vdwg.mxu0
        %v2180 = vcombine.low %v2046, %v2132
        %v2181 = vcombine.high %v2046, %v2132
        %v2183 = vunpack.c.l.s4 1983009808
        %v2184 = vunpack.c.0.s8 %v2183
        %v2185 = vlaneseq
        %v2186 = vshrl.u32 %v2185, 7
        %v2187 = vsub.s32 %v2184, %v2186
        %v2188 = vrot.slane %v2180, %v2187
        %v2190 = vunpack.c.l.s4 1983009808
        %v2191 = vunpack.c.0.s8 %v2190
        %v2192 = vlaneseq
        %v2193 = vshrl.u32 %v2192, 7
        %v2194 = vsub.s32 %v2191, %v2193
        %v2195 = vrot.slane %v2181, %v2194
        %v2196 = vcombine.low %v2089, %v2175
        %v2197 = vcombine.high %v2089, %v2175
        %v2199 = vunpack.c.l.s4 1983009808
        %v2200 = vunpack.c.0.s8 %v2199
        %v2201 = vlaneseq
        %v2202 = vshrl.u32 %v2201, 7
        %v2203 = vsub.s32 %v2200, %v2202
        %v2204 = vrot.slane %v2196, %v2203
        %v2206 = vunpack.c.l.s4 1983009808
        %v2207 = vunpack.c.0.s8 %v2206
        %v2208 = vlaneseq
        %v2209 = vshrl.u32 %v2208, 7
        %v2210 = vsub.s32 %v2207, %v2209
        %v2211 = vrot.slane %v2197, %v2210
        %v2212 = vcombine.low %v2188, %v2204
        %v2213 = vcombine.high %v2188, %v2204
        %v2215 = vunpack.c.l.s4 1934713408
        %v2216 = vunpack.c.0.s8 %v2215
        %v2217 = vlaneseq
        %v2218 = vshrl.u32 %v2217, 7
        %v2219 = vsub.s32 %v2216, %v2218
        %v2220 = vrot.slane %v2212, %v2219
        %v2222 = vunpack.c.l.s4 1934713408
        %v2223 = vunpack.c.0.s8 %v2222
        %v2224 = vlaneseq
        %v2225 = vshrl.u32 %v2224, 7
        %v2226 = vsub.s32 %v2223, %v2225
        %v2227 = vrot.slane %v2213, %v2226
        %v2228 = vcombine.low %v2195, %v2211
        %v2229 = vcombine.high %v2195, %v2211
        %v2231 = vunpack.c.l.s4 1934713408
        %v2232 = vunpack.c.0.s8 %v2231
        %v2233 = vlaneseq
        %v2234 = vshrl.u32 %v2233, 7
        %v2235 = vsub.s32 %v2232, %v2234
        %v2236 = vrot.slane %v2228, %v2235
        %v2238 = vunpack.c.l.s4 1934713408
        %v2239 = vunpack.c.0.s8 %v2238
        %v2240 = vlaneseq
        %v2241 = vshrl.u32 %v2240, 7
        %v2242 = vsub.s32 %v2239, %v2241
        %v2243 = vrot.slane %v2229, %v2242
        %v2244 = vcombine.high %v2220, 0.0
        %v2245 = vcombine.high %v2227, 0.0
        %v2246 = vcombine.high %v2236, 0.0
        %v2247 = vcombine.high %v2243, 0.0
        %v2248 = vcombine.low %v2220, %v2227
        %v2250 = vunpack.c.l.s4 1983009808
        %v2251 = vunpack.c.0.s8 %v2250
        %v2252 = vlaneseq
        %v2253 = vshrl.u32 %v2252, 7
        %v2254 = vsub.s32 %v2251, %v2253
        %v2255 = vrot.slane %v2248, %v2254
        %v2256 = vcombine.low %v2244, %v2245
        %v2258 = vunpack.c.l.s4 1983009808
        %v2259 = vunpack.c.0.s8 %v2258
        %v2260 = vlaneseq
        %v2261 = vshrl.u32 %v2260, 7
        %v2262 = vsub.s32 %v2259, %v2261
        %v2263 = vrot.slane %v2256, %v2262
        %v2264 = vcombine.low %v2236, %v2243
        %v2266 = vunpack.c.l.s4 1983009808
        %v2267 = vunpack.c.0.s8 %v2266
        %v2268 = vlaneseq
        %v2269 = vshrl.u32 %v2268, 7
        %v2270 = vsub.s32 %v2267, %v2269
        %v2271 = vrot.slane %v2264, %v2270
        %v2272 = vcombine.low %v2246, %v2247
        %v2274 = vunpack.c.l.s4 1983009808
        %v2275 = vunpack.c.0.s8 %v2274
        %v2276 = vlaneseq
        %v2277 = vshrl.u32 %v2276, 7
        %v2278 = vsub.s32 %v2275, %v2277
        %v2279 = vrot.slane %v2272, %v2278
        %v2280 = vcombine.low %v2255, %v2263
        %v2281 = vcombine.high %v2255, %v2263
        %v2283 = vunpack.c.l.s4 1934713408
        %v2284 = vunpack.c.0.s8 %v2283
        %v2285 = vlaneseq
        %v2286 = vshrl.u32 %v2285, 7
        %v2287 = vsub.s32 %v2284, %v2286
        %v2288 = vrot.slane %v2280, %v2287
        %v2290 = vunpack.c.l.s4 1934713408
        %v2291 = vunpack.c.0.s8 %v2290
        %v2292 = vlaneseq
        %v2293 = vshrl.u32 %v2292, 7
        %v2294 = vsub.s32 %v2291, %v2293
        %v2295 = vrot.slane %v2281, %v2294
        %v2296 = vcombine.low %v2271, %v2279
        %v2297 = vcombine.high %v2271, %v2279
        %v2299 = vunpack.c.l.s4 1934713408
        %v2300 = vunpack.c.0.s8 %v2299
        %v2301 = vlaneseq
        %v2302 = vshrl.u32 %v2301, 7
        %v2303 = vsub.s32 %v2300, %v2302
        %v2304 = vrot.slane %v2296, %v2303
        %v2306 = vunpack.c.l.s4 1934713408
        %v2307 = vunpack.c.0.s8 %v2306
        %v2308 = vlaneseq
        %v2309 = vshrl.u32 %v2308, 7
        %v2310 = vsub.s32 %v2307, %v2309
        %v2311 = vrot.slane %v2297, %v2310
        %v2312 = vcombine.low %v2288, %v2304
        %v2313 = vcombine.high %v2288, %v2304
        %v2314 = vcombine.low %v2295, %v2311
        %v2315 = vcombine.high %v2295, %v2311
        %2317 = vrot.lane.b32.xlu0 %v2313, 32
        %v2318 = vpop.permute.xlu0 %2317
        %2321 = vrot.lane.b32.xlu0 %v2314, 64
        %v2322 = vpop.permute.xlu0 %2321
        %2325 = vrot.lane.b32.xlu0 %v2315, 96
        %v2326 = vpop.permute.xlu0 %2325
        %v2328 = vsel %vm1760, %v2312, %v2318
        %vm2329 = vcmask 523264
        %v2330 = vsel %vm2329, %v2328, %v2322
        %vm2331 = vcmask 785408
        %v2332 = vsel %vm2331, %v2330, %v2326
        %v2333 = vpack.c.bf16 %v2332, %v2332
        %v2334 = vld [vmem:[#allocation13] sm:$0xf]
        %v2335 = vld [vmem:[#allocation13 + $0x4] sm:$0xf]
        %v2336 = vld [vmem:[#allocation13 + $0x8] sm:$0xf]
        %v2337 = vld [vmem:[#allocation13 + $0xc] sm:$0xf]
        %v2338 = vld [vmem:[#allocation13 + $0x10] sm:$0xf]
        %v2339 = vld [vmem:[#allocation13 + $0x14] sm:$0xf]
        %v2340 = vld [vmem:[#allocation13 + $0x18] sm:$0xf]
        %v2341 = vld [vmem:[#allocation13 + $0x1c] sm:$0xf]
        %v2342 = vld [vmem:[#allocation13 + $0x20] sm:$0xf]
        %v2343 = vld [vmem:[#allocation13 + $0x24] sm:$0xf]
        %v2344 = vld [vmem:[#allocation13 + $0x28] sm:$0xf]
        %v2345 = vld [vmem:[#allocation13 + $0x2c] sm:$0xf]
        %v2346 = vld [vmem:[#allocation13 + $0x30] sm:$0xf]
        %v2347 = vld [vmem:[#allocation13 + $0x34] sm:$0xf]
        %v2348 = vld [vmem:[#allocation13 + $0x38] sm:$0xf]
        %v2349 = vld [vmem:[#allocation13 + $0x3c] sm:$0xf]
        %v2350 = vld [vmem:[%s12] sm:$0x1]
        %v2352 = vlaneseq
        %v2353 = vshrl.u32 %v2352, 7
        %v2354 = vsub.s32 0, %v2353
        %v2355 = vrot.slane %v2350, %v2354
        %v2373 = vunpack.c.l.b16 %v2334
        %v2374 = vunpack.c.l.b16 %v2335
        %v2375 = vunpack.c.l.b16 %v2336
        %v2376 = vunpack.c.l.b16 %v2337
        %v2377 = vunpack.c.l.b16 %v2338
        %v2378 = vunpack.c.l.b16 %v2339
        %v2379 = vunpack.c.l.b16 %v2340
        %v2380 = vunpack.c.l.b16 %v2341
        %v2381 = vunpack.c.l.b16 %v2342
        %v2382 = vunpack.c.l.b16 %v2343
        %v2383 = vunpack.c.l.b16 %v2344
        %v2384 = vunpack.c.l.b16 %v2345
        %v2385 = vunpack.c.l.b16 %v2346
        %v2386 = vunpack.c.l.b16 %v2347
        %v2387 = vunpack.c.l.b16 %v2348
        %v2388 = vunpack.c.l.b16 %v2349
        %v2389 = vpack.c.b16 %v2374, %v2373
        %v2390 = vpack.c.b16 %v2376, %v2375
        %v2391 = vpack.c.b16 %v2378, %v2377
        %v2392 = vpack.c.b16 %v2380, %v2379
        %v2393 = vpack.c.b16 %v2382, %v2381
        %v2394 = vpack.c.b16 %v2384, %v2383
        %v2395 = vpack.c.b16 %v2386, %v2385
        %v2396 = vpack.c.b16 %v2388, %v2387
        %2405 = vmatprep.subr.bf16.mxu0 0
        %2406 = vmatpush1.bf16.msra.mxu0 %v2389
        %2407 = vmatprep.subr.bf16.mxu0 0
        %2408 = vmatpush1.bf16.msra.mxu0 %v2390
        %2409 = vmatprep.subr.bf16.mxu0 0
        %2410 = vmatpush1.bf16.msra.mxu0 %v2391
        %2411 = vmatprep.subr.bf16.mxu0 0
        %2412 = vmatpush1.bf16.msra.mxu0 %v2392
        %2413 = vmatprep.subr.bf16.mxu0 0
        %2414 = vmatpush1.bf16.msra.mxu0 %v2393
        %2415 = vmatprep.subr.bf16.mxu0 0
        %2416 = vmatpush1.bf16.msra.mxu0 %v2394
        %2417 = vmatprep.subr.bf16.mxu0 0
        %2418 = vmatpush1.bf16.msra.mxu0 %v2395
        %2419 = vmatprep.subr.bf16.mxu0 0
        %2420 = vmatpush1.bf16.msra.mxu0 %v2396
        %2421 = vmatprep.subr.bf16.mxu0 0
        %2422 = vmatpush1.bf16.msra.mxu0 0
        %2423 = vmatprep.subr.bf16.mxu0 0
        %2424 = vmatpush1.bf16.msra.mxu0 0
        %2425 = vmatprep.subr.bf16.mxu0 0
        %2426 = vmatpush1.bf16.msra.mxu0 0
        %2427 = vmatprep.subr.bf16.mxu0 0
        %2428 = vmatpush1.bf16.msra.mxu0 0
        %2429 = vmatprep.subr.bf16.mxu0 0
        %2430 = vmatpush1.bf16.msra.mxu0 0
        %2431 = vmatprep.subr.bf16.mxu0 0
        %2432 = vmatpush1.bf16.msra.mxu0 0
        %2433 = vmatprep.subr.bf16.mxu0 0
        %2434 = vmatpush1.bf16.msra.mxu0 0
        %2435 = vmatprep.subr.bf16.mxu0 0
        %2436 = vmatpush1.bf16.msra.mxu0 0
        %2437 = vmatprep.mubr.bf16.mxu0 0
        %2438 = vmatmul.mubr.bf16.gmra.mrb[0].mxu0 %v2333
        %v2439 = vpop.f32.mrb[0].mxu0
        %v2440 = vadd.f32 %v2355, %v2439
        %v2441 = vpop.f32.mrb[0].mxu0
        %v2442 = vpop.f32.mrb[0].mxu0
        %v2443 = vpop.f32.mrb[0].mxu0
        %2444 = vdwg.mxu0
        %v2445 = vadd.f32 %v1465, %v2440
        %2446 = vst [vmem:[%s584] sm:$0xff] %v2445
        %s2447 = sand.u32 %s347, 1
        %s2448 = scalar_lea.sflag [#allocation6], %s2447
        %s2449 = sand.u32 %s347, 1
        %s2450 = smul.addr %s2449, 8
        %s2451 = scalar_lea.vmem [#allocation15], %s2450
        // Predicated region
        $region101: #{tpu_custom_call.1} parent=71 // pred_check
          %p2452 = pneg %p357
        $region102: #{tpu_custom_call.1} parent=71 // pred_check_branch
          %2454 = sbr.rel (%p2452) target = $region104
        $region103: #{tpu_custom_call.1} parent=71 // pred_region
          %s2456 = ssub.s32 128, 128
          %2457 = vsyncadd %s2448, %s2456
          %s2458 = smul.addr %s39, 2
          %s2459 = sadd.s32 %s40, %s2458
          %s2460 = smul.addr %s2459, 128
          %s2461 = scalar_lea.hbm %s13, %s2460
          %s2463 = sshll.u32 %s2451, 4
          %s2464 = int_to_ptr.vmem [resolvable:$true] %s2463
          %2466 = dma.vmem_to_hbm [thread:$0]  %s2464, 128, %s2461, %s2448
        $region104: #{tpu_custom_call.1} parent=71 // pred_fallthru
          _
      $region72: #{tpu_custom_call.1} parent=5 // pred_fallthru
        _
      %p2467 = scmp.le.s32.totalorder 2, %s30
      // Predicated region
      $region105: #{tpu_custom_call.1} parent=5 // pred_check
        %p2468 = pneg %p2467
      $region106: #{tpu_custom_call.1} parent=5 // pred_check_branch
        %2470 = sbr.rel (%p2468) target = $region108
      $region107: #{tpu_custom_call.1} parent=5 // pred_region
        %s2471 = ssub.s32 %s30, 2
        // Predicated region
        $region109: #{tpu_custom_call.1} parent=107 // pred_check
          %p2472 = pneg %p363
        $region110: #{tpu_custom_call.1} parent=107 // pred_check_branch
          %2474 = sbr.rel (%p2472) target = $region112
        $region111: #{tpu_custom_call.1} parent=107 // pred_region
          %s2475 = sand.u32 %s348, 1
          %s2476 = scalar_lea.sflag [#allocation6], %s2475
          %s2477 = sand.u32 %s348, 1
          %s2478 = smul.addr %s2477, 8
          %s2479 = scalar_lea.vmem [#allocation15], %s2478
          %2480 = dma.done %s2476, 128
        $region112: #{tpu_custom_call.1} parent=107 // pred_fallthru
          _
      $region108: #{tpu_custom_call.1} parent=5 // pred_fallthru
        _
    $region6: #{tpu_custom_call.1} parent=1 // loop_footer
      %s34 = sadd.s32 1, %s30
    $region7: #{tpu_custom_call.1} parent=1 // loop_footer_branch
      %29 = sbr.rel target = $region3
    $region8: #{tpu_custom_call.1} parent=1 // loop_exit
      _
    %2481 = vsyncpa [#allocation5], 1
    %s2482 = scalar_lea.sflag [#allocation5], 1
    %2483 = vsyncpa %s2482, 1
    %2484 = vsyncpa [#allocation8], 1
    %s2485 = scalar_lea.sflag [#allocation8], 1
    %2486 = vsyncpa %s2485, 1
    %2487 = vsyncpa [#allocation11], 1
    %2488 = vsyncpa [#allocation14], 1
    %2489 = vsyncpa [#allocation6], 1
    %s2490 = scalar_lea.sflag [#allocation6], 1
    %2491 = vsyncpa %s2490, 1

</llo_original>
